<compile_context>
chip_gen: v7x
topology: tpu7x:2x2x1
jax: 0.10.0
libtpu: 0.0.40
codegen_flags: <defaults>
</compile_context>

<pallas_src>
import functools

import jax
import jax.numpy as jnp
import numpy as np
from jax import lax
from jax.experimental import pallas as pl
from jax.experimental.pallas import tpu as pltpu

V = 512            # vocabulary size
H = 128            # hidden size
S = 8              # encoder context length (tokens)
LANE = 128


def _f32_key(bits_i32):
    """Monotone int32 key for IEEE-754 f32 ordering (order-preserving)."""
    return jnp.where(bits_i32 >= 0, bits_i32, bits_i32 ^ jnp.int32(0x7FFFFFFF))


def _generate_kernel(enc_ctx_ref,         # VMEM (1, H)  f32   (resident)
                     emb_ref,             # VMEM (V, H)  f32   (resident)
                     w_ref,               # VMEM (H, V)  bf16  (resident)
                     gumbel_ref,          # VMEM (T, V)  f32   (resident noise)
                     logits_out_ref,      # VMEM (T, V)  f32   per-step logits
                     tok_out_ref,         # SMEM (T,)    i32   per-step token
                     valid_out_ref,       # SMEM (T,)    i32   per-step valid flag
                     mask_ref,            # VMEM (1, V)  f32   repetition mask
                     prev_ref,            # SMEM (1,)    i32   last generated token
                     done_ref,            # SMEM (1,)    i32   eos latch
                     *, temperature, repetition_penalty, top_k,
                     start_token, eos_token):
    n_steps = logits_out_ref.shape[0]

    vocab_i = lax.broadcasted_iota(jnp.int32, (1, V), 1)
    vocab_f = vocab_i.astype(jnp.float32)

    # ---- one-time init (single invocation, no grid) --------------------------
    prev_ref[0] = jnp.int32(start_token)
    done_ref[0] = jnp.int32(0)
    mask_ref[...] = (vocab_i == start_token).astype(jnp.float32)
    logits_out_ref[...] = jnp.zeros_like(logits_out_ref)

    inv_t = 1.0 / (temperature if temperature > 0 else 1.0)
    inv_rep = 1.0 / repetition_penalty

    def argmax_idx(x):                         # (1, V) f32 -> int32 scalar
        m = jnp.max(x)
        return jnp.min(jnp.where(x == m, vocab_f, jnp.float32(V))).astype(jnp.int32)

    def kth_largest_key(key, k):
        """Exact k-th largest of int32 keys via 32-step binary search
        (tie-correct, cost independent of k)."""
        def body(_, lh):
            lo, hi = lh
            # overflow-safe ceil midpoint
            mid = (lo & hi) + ((lo ^ hi) >> 1) + ((lo ^ hi) & 1)
            cnt = jnp.sum(jnp.where(key >= mid, jnp.float32(1.0), jnp.float32(0.0)))
            ok = cnt >= jnp.float32(k)
            return jnp.where(ok, mid, lo), jnp.where(ok, hi, mid - 1)

        lo, _ = lax.fori_loop(
            0, 32, body,
            (jnp.int32(-2147483647 - 1), jnp.int32(2147483647)),
            unroll=True)
        return lo

    # ---- decode loop (whole generation inside one kernel) --------------------
    def step(i, carry):
        done0 = done_ref[0]

        @pl.when(done0 == 0)
        def _active():
            prev_tok = prev_ref[0]
            # TODO(synk): synthetic single-layer decode step (embedding + mean
            # encoder context -> tanh -> vocab projection) stands in for the
            # full T5 encoder-decoder stack.
            dec_emb = emb_ref[pl.ds(prev_tok, 1), :]                    # (1, H)
            h = jnp.tanh(enc_ctx_ref[...] + dec_emb)                    # (1, H) f32
            logits = jnp.dot(h.astype(jnp.bfloat16), w_ref[...],
                             preferred_element_type=jnp.float32)        # (1, V) f32
            scaled = logits * inv_t

            # EOS check on pre-penalty temperature-scaled logits (as reference).
            arg = argmax_idx(scaled)
            produce = arg != eos_token
            p_i = produce.astype(jnp.int32)

            # Repetition penalty: unconditional divide (as reference).
            pen = jnp.where(mask_ref[...] > 0.0, scaled * inv_rep, scaled)

            if temperature == 0:
                out_logits = pen
                nxt = argmax_idx(pen)
            else:
                if top_k > 0:
                    key = _f32_key(lax.bitcast_convert_type(pen, jnp.int32))
                    kth = kth_largest_key(key, min(top_k, V))
                    filt = jnp.where(key < kth, -jnp.inf, pen)
                else:
                    filt = pen
                # TODO(synk): top_p (nucleus) filtering needs a full vocab
                # sort+cumsum; only top_p=0 is implemented in-kernel.
                out_logits = filt
                # multinomial(softmax(filt)) == argmax(filt + Gumbel noise)
                g = gumbel_ref[pl.ds(i, 1), :]                          # (1, V)
                nxt = argmax_idx(filt + g)

            nxt = jnp.where(produce, nxt, prev_tok)
            prev_ref[0] = nxt
            done_ref[0] = jnp.int32(1) - p_i
            mask_ref[...] = jnp.where(
                jnp.logical_and(produce, vocab_i == nxt), 1.0, mask_ref[...])

            logits_out_ref[pl.ds(i, 1), :] = out_logits
            tok_out_ref[i] = nxt
            valid_out_ref[i] = p_i

        @pl.when(done0 != 0)
        def _frozen():
            # Post-EOS: writeback-only (logits row already zeroed at init).
            tok_out_ref[i] = prev_ref[0]
            valid_out_ref[i] = jnp.int32(0)

        return carry

    lax.fori_loop(0, n_steps, step, jnp.int32(0))


@functools.partial(jax.jit,
                   static_argnames=("max_length", "temperature",
                                    "repetition_penalty", "top_k",
                                    "start_token", "eos_token"))
def generate(enc_ctx, emb, w_bf16, gumbel, *, max_length, temperature,
             repetition_penalty, top_k, start_token, eos_token):
    kern = functools.partial(_generate_kernel,
                             temperature=float(temperature),
                             repetition_penalty=float(repetition_penalty),
                             top_k=int(top_k),
                             start_token=int(start_token),
                             eos_token=int(eos_token))
    return pl.pallas_call(
        kern,
        out_shape=(
            jax.ShapeDtypeStruct((max_length, V), jnp.float32),   # per-step logits
            jax.ShapeDtypeStruct((max_length,), jnp.int32),       # sampled tokens
            jax.ShapeDtypeStruct((max_length,), jnp.int32),       # valid flags
        ),
        in_specs=[
            pl.BlockSpec(memory_space=pltpu.MemorySpace.VMEM),    # enc_ctx (1, H)
            pl.BlockSpec(memory_space=pltpu.MemorySpace.VMEM),    # embedding (V, H)
            pl.BlockSpec(memory_space=pltpu.MemorySpace.VMEM),    # w_out (H, V) bf16
            pl.BlockSpec(memory_space=pltpu.MemorySpace.VMEM),    # gumbel noise (T, V)
        ],
        out_specs=(
            pl.BlockSpec(memory_space=pltpu.MemorySpace.VMEM),
            pl.BlockSpec(memory_space=pltpu.MemorySpace.SMEM),
            pl.BlockSpec(memory_space=pltpu.MemorySpace.SMEM),
        ),
        scratch_shapes=[
            pltpu.VMEM((1, V), jnp.float32),    # repetition mask
            pltpu.SMEM((1,), jnp.int32),        # previous token
            pltpu.SMEM((1,), jnp.int32),        # eos latch
        ],
        compiler_params=pltpu.CompilerParams(
            vmem_limit_bytes=32 * 1024 * 1024),
    )(enc_ctx, emb, w_bf16, gumbel)


class GenerativeT5Pallas:
    """JAX/Pallas analogue of GenerativeT5: the whole single-beam decode loop
    (model eval, repetition penalty, top-k filtering, multinomial sampling)
    runs inside ONE Pallas kernel invocation."""

    def __init__(self, embedding, w_out, decoder_start_token_id=0, eos_token_id=1):
        self.embedding = jnp.asarray(embedding, jnp.float32)     # (V, H)
        self.w_out = jnp.asarray(w_out, jnp.bfloat16)            # (H, V)
        self.decoder_start_token_id = int(decoder_start_token_id)
        self.eos_token_id = int(eos_token_id)

    def forward(self, prompt_ids, max_length, temperature=1.0,
                repetition_penalty=1.0, top_k=50, top_p=0,
                max_context_length=512, seed=0):
        # TODO(synk): top_p > 0 (nucleus filtering) and the real tokenizer
        # decode have no in-kernel equivalent here; top_p is ignored and raw
        # token ids are returned instead of decoded text.
        # TODO(synk): on v7x, batch >= 2 independent sequences over a
        # "parallel" leading axis to use the second TensorCore.
        encoder_idx = jnp.asarray(prompt_ids)[: max_context_length - 1]
        enc_embs = self.embedding[encoder_idx]                   # (S, H)
        # Encoder context is constant across decode steps -> hoisted out of kernel.
        enc_ctx = jnp.mean(enc_embs, axis=0, keepdims=True)      # (1, H)

        # Precomputed Gumbel noise (portable; avoids in-kernel TPU PRNG).
        gumbel = jax.random.gumbel(jax.random.PRNGKey(int(seed)),
                                   (int(max_length), V), jnp.float32)

        logits_t, tok_t, valid_t = generate(
            enc_ctx, self.embedding, self.w_out, gumbel,
            max_length=int(max_length), temperature=float(temperature),
            repetition_penalty=float(repetition_penalty),
            top_k=int(min(top_k, V)),
            start_token=self.decoder_start_token_id,
            eos_token=self.eos_token_id)
        jax.block_until_ready((logits_t, tok_t, valid_t))

        # Single device->host transfer for the whole generation.
        valid = np.asarray(valid_t)                              # prefix of 1s (eos latch)
        n = int(valid.sum())
        tokens = [int(t) for t in np.asarray(tok_t[:n])]
        logits = [np.asarray(row) for row in np.asarray(logits_t[:n])]
        return tokens, logits


if __name__ == "__main__":
    key = jax.random.PRNGKey(0)
    k_emb, k_w, k_prompt = jax.random.split(key, 3)

    embedding = 0.1 * jax.random.normal(k_emb, (V, H), jnp.float32)
    w_out = 0.1 * jax.random.normal(k_w, (H, V), jnp.float32)

    model = GenerativeT5Pallas(embedding, w_out,
                               decoder_start_token_id=0, eos_token_id=1)

    prompt_ids = jax.random.randint(k_prompt, (S,), 0, V)        # fake tokenizer output
    tokens, logits = model.forward(prompt_ids, max_length=6, temperature=1.0,
                                   repetition_penalty=1.2, top_k=8, top_p=0,
                                   seed=1234)
    print("KERNEL_OK")
</pallas_src>

<mosaic_0001>
module attributes {stable_mosaic.version = 11 : i64} {
  func.func @_generate_kernel(%arg0: memref<1x128xf32, #tpu.memory_space<vmem>>, %arg1: memref<512x128xf32, #tpu.memory_space<vmem>>, %arg2: memref<128x512xbf16, #tpu.memory_space<vmem>>, %arg3: memref<6x512xf32, #tpu.memory_space<vmem>>, %arg4: memref<6x512xf32, #tpu.memory_space<vmem>>, %arg5: memref<6xi32, #tpu.memory_space<smem>>, %arg6: memref<6xi32, #tpu.memory_space<smem>>, %arg7: memref<1x512xf32, #tpu.memory_space<vmem>>, %arg8: memref<1xi32, #tpu.memory_space<smem>>, %arg9: memref<1xi32, #tpu.memory_space<smem>>) attributes {dimension_semantics = [], scalar_prefetch = 0 : i64, scratch_operands = 3 : i64, tpu.core_type = #tpu.core_type<tc>} {
    %0 = tpu.iota {dimensions = array<i32: 1>} : vector<1x512xi32>
    %1 = arith.sitofp %0 : vector<1x512xi32> to vector<1x512xf32>
    %c0_i32 = arith.constant 0 : i32
    %c0 = arith.constant 0 : index
    %2 = memref.load %arg8[%c0] : memref<1xi32, #tpu.memory_space<smem>>
    memref.store %c0_i32, %arg8[%c0] : memref<1xi32, #tpu.memory_space<smem>>
    %c0_i32_0 = arith.constant 0 : i32
    %c0_1 = arith.constant 0 : index
    %3 = memref.load %arg9[%c0_1] : memref<1xi32, #tpu.memory_space<smem>>
    memref.store %c0_i32_0, %arg9[%c0_1] : memref<1xi32, #tpu.memory_space<smem>>
    %c0_i32_2 = arith.constant 0 : i32
    %4 = vector.broadcast %c0_i32_2 : i32 to vector<1x512xi32>
    %5 = arith.cmpi eq, %0, %4 : vector<1x512xi32>
    %6 = arith.extui %5 : vector<1x512xi1> to vector<1x512xi32>
    %7 = arith.sitofp %6 : vector<1x512xi32> to vector<1x512xf32>
    %c0_3 = arith.constant 0 : index
    %c0_4 = arith.constant 0 : index
    %8 = vector.load %arg7[%c0_3, %c0_4] : memref<1x512xf32, #tpu.memory_space<vmem>>, vector<1x512xf32>
    tpu.vector_store %arg7[%c0_3, %c0_4], %7 {strides = array<i32>} : memref<1x512xf32, #tpu.memory_space<vmem>>, vector<1x512xf32>,
    %cst = arith.constant 0.000000e+00 : f32
    %9 = vector.broadcast %cst : f32 to vector<6x512xf32>
    %c0_5 = arith.constant 0 : index
    %c0_6 = arith.constant 0 : index
    %10 = vector.load %arg4[%c0_5, %c0_6] : memref<6x512xf32, #tpu.memory_space<vmem>>, vector<6x512xf32>
    tpu.vector_store %arg4[%c0_5, %c0_6], %9 {strides = array<i32>} : memref<6x512xf32, #tpu.memory_space<vmem>>, vector<6x512xf32>,
    %c0_i32_7 = arith.constant 0 : i32
    %c6_i32 = arith.constant 6 : i32
    %11 = arith.addi %c0_i32_7, %c6_i32 : i32
    %c1_i32 = arith.constant 1 : i32
    scf.for %arg10 = %c0_i32_7 to %11 step %c1_i32  : i32 {
      %c0_9 = arith.constant 0 : index
      %12 = memref.load %arg9[%c0_9] : memref<1xi32, #tpu.memory_space<smem>>
      %c0_i32_10 = arith.constant 0 : i32
      %13 = arith.cmpi eq, %12, %c0_i32_10 : i32
      %14 = arith.extui %13 : i1 to i32
      %c0_i32_11 = arith.constant 0 : i32
      %15 = arith.cmpi ne, %14, %c0_i32_11 : i32
      scf.if %15 {
        %c0_14 = arith.constant 0 : index
        %19 = memref.load %arg8[%c0_14] : memref<1xi32, #tpu.memory_space<smem>>
        %20 = arith.index_cast %19 : i32 to index
        %c0_15 = arith.constant 0 : index
        %21 = vector.load %arg1[%20, %c0_15] : memref<512x128xf32, #tpu.memory_space<vmem>>, vector<1x128xf32>
        %c0_16 = arith.constant 0 : index
        %c0_17 = arith.constant 0 : index
        %22 = vector.load %arg0[%c0_16, %c0_17] : memref<1x128xf32, #tpu.memory_space<vmem>>, vector<1x128xf32>
        %23 = arith.addf %22, %21 : vector<1x128xf32>
        %24 = math.tanh %23 : vector<1x128xf32>
        %25 = arith.truncf %24 : vector<1x128xf32> to vector<1x128xbf16>
        %c0_18 = arith.constant 0 : index
        %c0_19 = arith.constant 0 : index
        %26 = vector.load %arg2[%c0_18, %c0_19] : memref<128x512xbf16, #tpu.memory_space<vmem>>, vector<128x512xbf16>
        %cst_20 = arith.constant dense<0.000000e+00> : vector<1x512xf32>
        %27 = tpu.matmul %25, %26, %cst_20 {dimension_numbers = #tpu.dot_dimension_numbers<[1], [0], [0], [1], [0, 0, 1, 1], [], []>} : vector<1x128xbf16>, vector<128x512xbf16>, vector<1x512xf32> -> vector<1x512xf32>
        %cst_21 = arith.constant 1.000000e+00 : f32
        %28 = vector.broadcast %cst_21 : f32 to vector<1x512xf32>
        %29 = arith.mulf %27, %28 : vector<1x512xf32>
        %30 = vector.shape_cast %29 : vector<1x512xf32> to vector<1x1x512xf32>
        %cst_22 = arith.constant dense<0xFF800000> : vector<1xf32>
        %31 = vector.multi_reduction <maximumf>, %30, %cst_22 [1, 2] : vector<1x1x512xf32> to vector<1xf32>
        %32 = vector.shape_cast %31 : vector<1xf32> to vector<1x1x1xf32>
        %33 = vector.extract %32[0, 0, 0] : f32 from vector<1x1x1xf32>
        %34 = vector.broadcast %33 : f32 to vector<1x512xf32>
        %35 = arith.cmpf oeq, %29, %34 : vector<1x512xf32>
        %cst_23 = arith.constant 5.120000e+02 : f32
        %36 = vector.broadcast %cst_23 : f32 to vector<1x512xf32>
        %37 = arith.select %35, %1, %36 : vector<1x512xi1>, vector<1x512xf32>
        %38 = vector.shape_cast %37 : vector<1x512xf32> to vector<1x1x512xf32>
        %cst_24 = arith.constant dense<0x7F800000> : vector<1xf32>
        %39 = vector.multi_reduction <minimumf>, %38, %cst_24 [1, 2] : vector<1x1x512xf32> to vector<1xf32>
        %40 = vector.shape_cast %39 : vector<1xf32> to vector<1x1x1xf32>
        %41 = vector.extract %40[0, 0, 0] : f32 from vector<1x1x1xf32>
        %42 = arith.fptosi %41 : f32 to i32
        %c1_i32_25 = arith.constant 1 : i32
        %43 = arith.cmpi ne, %42, %c1_i32_25 : i32
        %44 = arith.extui %43 : i1 to i32
        %c0_26 = arith.constant 0 : index
        %c0_27 = arith.constant 0 : index
        %45 = vector.load %arg7[%c0_26, %c0_27] : memref<1x512xf32, #tpu.memory_space<vmem>>, vector<1x512xf32>
        %cst_28 = arith.constant 0.000000e+00 : f32
        %46 = vector.broadcast %cst_28 : f32 to vector<1x512xf32>
        %47 = arith.cmpf ogt, %45, %46 : vector<1x512xf32>
        %cst_29 = arith.constant 0.833333313 : f32
        %48 = vector.broadcast %cst_29 : f32 to vector<1x512xf32>
        %49 = arith.mulf %29, %48 : vector<1x512xf32>
        %50 = arith.select %47, %49, %29 : vector<1x512xi1>, vector<1x512xf32>
        %51 = tpu.bitcast %50 : vector<1x512xf32> -> vector<1x512xi32>
        %c0_i32_30 = arith.constant 0 : i32
        %52 = vector.broadcast %c0_i32_30 : i32 to vector<1x512xi32>
        %53 = arith.cmpi sge, %51, %52 : vector<1x512xi32>
        %c2147483647_i32 = arith.constant 2147483647 : i32
        %54 = vector.broadcast %c2147483647_i32 : i32 to vector<1x512xi32>
        %55 = arith.xori %51, %54 : vector<1x512xi32>
        %56 = arith.select %53, %51, %55 : vector<1x512xi1>, vector<1x512xi32>
        %c-2147483648_i32 = arith.constant -2147483648 : i32
        %c2147483647_i32_31 = arith.constant 2147483647 : i32
        %c0_i32_32 = arith.constant 0 : i32
        %57 = arith.andi %c-2147483648_i32, %c2147483647_i32_31 : i32
        %58 = arith.xori %c-2147483648_i32, %c2147483647_i32_31 : i32
        %c1_i32_33 = arith.constant 1 : i32
        %59 = arith.shrsi %58, %c1_i32_33 : i32
        %60 = arith.addi %57, %59 : i32
        %61 = arith.xori %c-2147483648_i32, %c2147483647_i32_31 : i32
        %c1_i32_34 = arith.constant 1 : i32
        %62 = arith.andi %61, %c1_i32_34 : i32
        %63 = arith.addi %60, %62 : i32
        %64 = vector.broadcast %63 : i32 to vector<1x512xi32>
        %65 = arith.cmpi sge, %56, %64 : vector<1x512xi32>
        %cst_35 = arith.constant 1.000000e+00 : f32
        %cst_36 = arith.constant 0.000000e+00 : f32
        %66 = vector.broadcast %cst_35 : f32 to vector<1x512xf32>
        %67 = vector.broadcast %cst_36 : f32 to vector<1x512xf32>
        %68 = arith.select %65, %66, %67 : vector<1x512xi1>, vector<1x512xf32>
        %69 = vector.shape_cast %68 : vector<1x512xf32> to vector<1x1x512xf32>
        %cst_37 = arith.constant dense<0.000000e+00> : vector<1xf32>
        %70 = vector.multi_reduction <add>, %69, %cst_37 [1, 2] : vector<1x1x512xf32> to vector<1xf32>
        %71 = vector.shape_cast %70 : vector<1xf32> to vector<1x1x1xf32>
        %72 = vector.extract %71[0, 0, 0] : f32 from vector<1x1x1xf32>
        %cst_38 = arith.constant 8.000000e+00 : f32
        %73 = arith.cmpf oge, %72, %cst_38 : f32
        %74 = arith.select %73, %63, %c-2147483648_i32 : i32
        %c1_i32_39 = arith.constant 1 : i32
        %75 = arith.subi %63, %c1_i32_39 : i32
        %76 = arith.select %73, %c2147483647_i32_31, %75 : i32
        %c1_i32_40 = arith.constant 1 : i32
        %77 = arith.andi %74, %76 : i32
        %78 = arith.xori %74, %76 : i32
        %c1_i32_41 = arith.constant 1 : i32
        %79 = arith.shrsi %78, %c1_i32_41 : i32
        %80 = arith.addi %77, %79 : i32
        %81 = arith.xori %74, %76 : i32
        %c1_i32_42 = arith.constant 1 : i32
        %82 = arith.andi %81, %c1_i32_42 : i32
        %83 = arith.addi %80, %82 : i32
        %84 = vector.broadcast %83 : i32 to vector<1x512xi32>
        %85 = arith.cmpi sge, %56, %84 : vector<1x512xi32>
        %cst_43 = arith.constant 1.000000e+00 : f32
        %cst_44 = arith.constant 0.000000e+00 : f32
        %86 = vector.broadcast %cst_43 : f32 to vector<1x512xf32>
        %87 = vector.broadcast %cst_44 : f32 to vector<1x512xf32>
        %88 = arith.select %85, %86, %87 : vector<1x512xi1>, vector<1x512xf32>
        %89 = vector.shape_cast %88 : vector<1x512xf32> to vector<1x1x512xf32>
        %cst_45 = arith.constant dense<0.000000e+00> : vector<1xf32>
        %90 = vector.multi_reduction <add>, %89, %cst_45 [1, 2] : vector<1x1x512xf32> to vector<1xf32>
        %91 = vector.shape_cast %90 : vector<1xf32> to vector<1x1x1xf32>
        %92 = vector.extract %91[0, 0, 0] : f32 from vector<1x1x1xf32>
        %cst_46 = arith.constant 8.000000e+00 : f32
        %93 = arith.cmpf oge, %92, %cst_46 : f32
        %94 = arith.select %93, %83, %74 : i32
        %c1_i32_47 = arith.constant 1 : i32
        %95 = arith.subi %83, %c1_i32_47 : i32
        %96 = arith.select %93, %76, %95 : i32
        %c2_i32 = arith.constant 2 : i32
        %97 = arith.andi %94, %96 : i32
        %98 = arith.xori %94, %96 : i32
        %c1_i32_48 = arith.constant 1 : i32
        %99 = arith.shrsi %98, %c1_i32_48 : i32
        %100 = arith.addi %97, %99 : i32
        %101 = arith.xori %94, %96 : i32
        %c1_i32_49 = arith.constant 1 : i32
        %102 = arith.andi %101, %c1_i32_49 : i32
        %103 = arith.addi %100, %102 : i32
        %104 = vector.broadcast %103 : i32 to vector<1x512xi32>
        %105 = arith.cmpi sge, %56, %104 : vector<1x512xi32>
        %cst_50 = arith.constant 1.000000e+00 : f32
        %cst_51 = arith.constant 0.000000e+00 : f32
        %106 = vector.broadcast %cst_50 : f32 to vector<1x512xf32>
        %107 = vector.broadcast %cst_51 : f32 to vector<1x512xf32>
        %108 = arith.select %105, %106, %107 : vector<1x512xi1>, vector<1x512xf32>
        %109 = vector.shape_cast %108 : vector<1x512xf32> to vector<1x1x512xf32>
        %cst_52 = arith.constant dense<0.000000e+00> : vector<1xf32>
        %110 = vector.multi_reduction <add>, %109, %cst_52 [1, 2] : vector<1x1x512xf32> to vector<1xf32>
        %111 = vector.shape_cast %110 : vector<1xf32> to vector<1x1x1xf32>
        %112 = vector.extract %111[0, 0, 0] : f32 from vector<1x1x1xf32>
        %cst_53 = arith.constant 8.000000e+00 : f32
        %113 = arith.cmpf oge, %112, %cst_53 : f32
        %114 = arith.select %113, %103, %94 : i32
        %c1_i32_54 = arith.constant 1 : i32
        %115 = arith.subi %103, %c1_i32_54 : i32
        %116 = arith.select %113, %96, %115 : i32
        %c3_i32 = arith.constant 3 : i32
        %117 = arith.andi %114, %116 : i32
        %118 = arith.xori %114, %116 : i32
        %c1_i32_55 = arith.constant 1 : i32
        %119 = arith.shrsi %118, %c1_i32_55 : i32
        %120 = arith.addi %117, %119 : i32
        %121 = arith.xori %114, %116 : i32
        %c1_i32_56 = arith.constant 1 : i32
        %122 = arith.andi %121, %c1_i32_56 : i32
        %123 = arith.addi %120, %122 : i32
        %124 = vector.broadcast %123 : i32 to vector<1x512xi32>
        %125 = arith.cmpi sge, %56, %124 : vector<1x512xi32>
        %cst_57 = arith.constant 1.000000e+00 : f32
        %cst_58 = arith.constant 0.000000e+00 : f32
        %126 = vector.broadcast %cst_57 : f32 to vector<1x512xf32>
        %127 = vector.broadcast %cst_58 : f32 to vector<1x512xf32>
        %128 = arith.select %125, %126, %127 : vector<1x512xi1>, vector<1x512xf32>
        %129 = vector.shape_cast %128 : vector<1x512xf32> to vector<1x1x512xf32>
        %cst_59 = arith.constant dense<0.000000e+00> : vector<1xf32>
        %130 = vector.multi_reduction <add>, %129, %cst_59 [1, 2] : vector<1x1x512xf32> to vector<1xf32>
        %131 = vector.shape_cast %130 : vector<1xf32> to vector<1x1x1xf32>
        %132 = vector.extract %131[0, 0, 0] : f32 from vector<1x1x1xf32>
        %cst_60 = arith.constant 8.000000e+00 : f32
        %133 = arith.cmpf oge, %132, %cst_60 : f32
        %134 = arith.select %133, %123, %114 : i32
        %c1_i32_61 = arith.constant 1 : i32
        %135 = arith.subi %123, %c1_i32_61 : i32
        %136 = arith.select %133, %116, %135 : i32
        %c4_i32 = arith.constant 4 : i32
        %137 = arith.andi %134, %136 : i32
        %138 = arith.xori %134, %136 : i32
        %c1_i32_62 = arith.constant 1 : i32
        %139 = arith.shrsi %138, %c1_i32_62 : i32
        %140 = arith.addi %137, %139 : i32
        %141 = arith.xori %134, %136 : i32
        %c1_i32_63 = arith.constant 1 : i32
        %142 = arith.andi %141, %c1_i32_63 : i32
        %143 = arith.addi %140, %142 : i32
        %144 = vector.broadcast %143 : i32 to vector<1x512xi32>
        %145 = arith.cmpi sge, %56, %144 : vector<1x512xi32>
        %cst_64 = arith.constant 1.000000e+00 : f32
        %cst_65 = arith.constant 0.000000e+00 : f32
        %146 = vector.broadcast %cst_64 : f32 to vector<1x512xf32>
        %147 = vector.broadcast %cst_65 : f32 to vector<1x512xf32>
        %148 = arith.select %145, %146, %147 : vector<1x512xi1>, vector<1x512xf32>
        %149 = vector.shape_cast %148 : vector<1x512xf32> to vector<1x1x512xf32>
        %cst_66 = arith.constant dense<0.000000e+00> : vector<1xf32>
        %150 = vector.multi_reduction <add>, %149, %cst_66 [1, 2] : vector<1x1x512xf32> to vector<1xf32>
        %151 = vector.shape_cast %150 : vector<1xf32> to vector<1x1x1xf32>
        %152 = vector.extract %151[0, 0, 0] : f32 from vector<1x1x1xf32>
        %cst_67 = arith.constant 8.000000e+00 : f32
        %153 = arith.cmpf oge, %152, %cst_67 : f32
        %154 = arith.select %153, %143, %134 : i32
        %c1_i32_68 = arith.constant 1 : i32
        %155 = arith.subi %143, %c1_i32_68 : i32
        %156 = arith.select %153, %136, %155 : i32
        %c5_i32 = arith.constant 5 : i32
        %157 = arith.andi %154, %156 : i32
        %158 = arith.xori %154, %156 : i32
        %c1_i32_69 = arith.constant 1 : i32
        %159 = arith.shrsi %158, %c1_i32_69 : i32
        %160 = arith.addi %157, %159 : i32
        %161 = arith.xori %154, %156 : i32
        %c1_i32_70 = arith.constant 1 : i32
        %162 = arith.andi %161, %c1_i32_70 : i32
        %163 = arith.addi %160, %162 : i32
        %164 = vector.broadcast %163 : i32 to vector<1x512xi32>
        %165 = arith.cmpi sge, %56, %164 : vector<1x512xi32>
        %cst_71 = arith.constant 1.000000e+00 : f32
        %cst_72 = arith.constant 0.000000e+00 : f32
        %166 = vector.broadcast %cst_71 : f32 to vector<1x512xf32>
        %167 = vector.broadcast %cst_72 : f32 to vector<1x512xf32>
        %168 = arith.select %165, %166, %167 : vector<1x512xi1>, vector<1x512xf32>
        %169 = vector.shape_cast %168 : vector<1x512xf32> to vector<1x1x512xf32>
        %cst_73 = arith.constant dense<0.000000e+00> : vector<1xf32>
        %170 = vector.multi_reduction <add>, %169, %cst_73 [1, 2] : vector<1x1x512xf32> to vector<1xf32>
        %171 = vector.shape_cast %170 : vector<1xf32> to vector<1x1x1xf32>
        %172 = vector.extract %171[0, 0, 0] : f32 from vector<1x1x1xf32>
        %cst_74 = arith.constant 8.000000e+00 : f32
        %173 = arith.cmpf oge, %172, %cst_74 : f32
        %174 = arith.select %173, %163, %154 : i32
        %c1_i32_75 = arith.constant 1 : i32
        %175 = arith.subi %163, %c1_i32_75 : i32
        %176 = arith.select %173, %156, %175 : i32
        %c6_i32_76 = arith.constant 6 : i32
        %177 = arith.andi %174, %176 : i32
        %178 = arith.xori %174, %176 : i32
        %c1_i32_77 = arith.constant 1 : i32
        %179 = arith.shrsi %178, %c1_i32_77 : i32
        %180 = arith.addi %177, %179 : i32
        %181 = arith.xori %174, %176 : i32
        %c1_i32_78 = arith.constant 1 : i32
        %182 = arith.andi %181, %c1_i32_78 : i32
        %183 = arith.addi %180, %182 : i32
        %184 = vector.broadcast %183 : i32 to vector<1x512xi32>
        %185 = arith.cmpi sge, %56, %184 : vector<1x512xi32>
        %cst_79 = arith.constant 1.000000e+00 : f32
        %cst_80 = arith.constant 0.000000e+00 : f32
        %186 = vector.broadcast %cst_79 : f32 to vector<1x512xf32>
        %187 = vector.broadcast %cst_80 : f32 to vector<1x512xf32>
        %188 = arith.select %185, %186, %187 : vector<1x512xi1>, vector<1x512xf32>
        %189 = vector.shape_cast %188 : vector<1x512xf32> to vector<1x1x512xf32>
        %cst_81 = arith.constant dense<0.000000e+00> : vector<1xf32>
        %190 = vector.multi_reduction <add>, %189, %cst_81 [1, 2] : vector<1x1x512xf32> to vector<1xf32>
        %191 = vector.shape_cast %190 : vector<1xf32> to vector<1x1x1xf32>
        %192 = vector.extract %191[0, 0, 0] : f32 from vector<1x1x1xf32>
        %cst_82 = arith.constant 8.000000e+00 : f32
        %193 = arith.cmpf oge, %192, %cst_82 : f32
        %194 = arith.select %193, %183, %174 : i32
        %c1_i32_83 = arith.constant 1 : i32
        %195 = arith.subi %183, %c1_i32_83 : i32
        %196 = arith.select %193, %176, %195 : i32
        %c7_i32 = arith.constant 7 : i32
        %197 = arith.andi %194, %196 : i32
        %198 = arith.xori %194, %196 : i32
        %c1_i32_84 = arith.constant 1 : i32
        %199 = arith.shrsi %198, %c1_i32_84 : i32
        %200 = arith.addi %197, %199 : i32
        %201 = arith.xori %194, %196 : i32
        %c1_i32_85 = arith.constant 1 : i32
        %202 = arith.andi %201, %c1_i32_85 : i32
        %203 = arith.addi %200, %202 : i32
        %204 = vector.broadcast %203 : i32 to vector<1x512xi32>
        %205 = arith.cmpi sge, %56, %204 : vector<1x512xi32>
        %cst_86 = arith.constant 1.000000e+00 : f32
        %cst_87 = arith.constant 0.000000e+00 : f32
        %206 = vector.broadcast %cst_86 : f32 to vector<1x512xf32>
        %207 = vector.broadcast %cst_87 : f32 to vector<1x512xf32>
        %208 = arith.select %205, %206, %207 : vector<1x512xi1>, vector<1x512xf32>
        %209 = vector.shape_cast %208 : vector<1x512xf32> to vector<1x1x512xf32>
        %cst_88 = arith.constant dense<0.000000e+00> : vector<1xf32>
        %210 = vector.multi_reduction <add>, %209, %cst_88 [1, 2] : vector<1x1x512xf32> to vector<1xf32>
        %211 = vector.shape_cast %210 : vector<1xf32> to vector<1x1x1xf32>
        %212 = vector.extract %211[0, 0, 0] : f32 from vector<1x1x1xf32>
        %cst_89 = arith.constant 8.000000e+00 : f32
        %213 = arith.cmpf oge, %212, %cst_89 : f32
        %214 = arith.select %213, %203, %194 : i32
        %c1_i32_90 = arith.constant 1 : i32
        %215 = arith.subi %203, %c1_i32_90 : i32
        %216 = arith.select %213, %196, %215 : i32
        %c8_i32 = arith.constant 8 : i32
        %217 = arith.andi %214, %216 : i32
        %218 = arith.xori %214, %216 : i32
        %c1_i32_91 = arith.constant 1 : i32
        %219 = arith.shrsi %218, %c1_i32_91 : i32
        %220 = arith.addi %217, %219 : i32
        %221 = arith.xori %214, %216 : i32
        %c1_i32_92 = arith.constant 1 : i32
        %222 = arith.andi %221, %c1_i32_92 : i32
        %223 = arith.addi %220, %222 : i32
        %224 = vector.broadcast %223 : i32 to vector<1x512xi32>
        %225 = arith.cmpi sge, %56, %224 : vector<1x512xi32>
        %cst_93 = arith.constant 1.000000e+00 : f32
        %cst_94 = arith.constant 0.000000e+00 : f32
        %226 = vector.broadcast %cst_93 : f32 to vector<1x512xf32>
        %227 = vector.broadcast %cst_94 : f32 to vector<1x512xf32>
        %228 = arith.select %225, %226, %227 : vector<1x512xi1>, vector<1x512xf32>
        %229 = vector.shape_cast %228 : vector<1x512xf32> to vector<1x1x512xf32>
        %cst_95 = arith.constant dense<0.000000e+00> : vector<1xf32>
        %230 = vector.multi_reduction <add>, %229, %cst_95 [1, 2] : vector<1x1x512xf32> to vector<1xf32>
        %231 = vector.shape_cast %230 : vector<1xf32> to vector<1x1x1xf32>
        %232 = vector.extract %231[0, 0, 0] : f32 from vector<1x1x1xf32>
        %cst_96 = arith.constant 8.000000e+00 : f32
        %233 = arith.cmpf oge, %232, %cst_96 : f32
        %234 = arith.select %233, %223, %214 : i32
        %c1_i32_97 = arith.constant 1 : i32
        %235 = arith.subi %223, %c1_i32_97 : i32
        %236 = arith.select %233, %216, %235 : i32
        %c9_i32 = arith.constant 9 : i32
        %237 = arith.andi %234, %236 : i32
        %238 = arith.xori %234, %236 : i32
        %c1_i32_98 = arith.constant 1 : i32
        %239 = arith.shrsi %238, %c1_i32_98 : i32
        %240 = arith.addi %237, %239 : i32
        %241 = arith.xori %234, %236 : i32
        %c1_i32_99 = arith.constant 1 : i32
        %242 = arith.andi %241, %c1_i32_99 : i32
        %243 = arith.addi %240, %242 : i32
        %244 = vector.broadcast %243 : i32 to vector<1x512xi32>
        %245 = arith.cmpi sge, %56, %244 : vector<1x512xi32>
        %cst_100 = arith.constant 1.000000e+00 : f32
        %cst_101 = arith.constant 0.000000e+00 : f32
        %246 = vector.broadcast %cst_100 : f32 to vector<1x512xf32>
        %247 = vector.broadcast %cst_101 : f32 to vector<1x512xf32>
        %248 = arith.select %245, %246, %247 : vector<1x512xi1>, vector<1x512xf32>
        %249 = vector.shape_cast %248 : vector<1x512xf32> to vector<1x1x512xf32>
        %cst_102 = arith.constant dense<0.000000e+00> : vector<1xf32>
        %250 = vector.multi_reduction <add>, %249, %cst_102 [1, 2] : vector<1x1x512xf32> to vector<1xf32>
        %251 = vector.shape_cast %250 : vector<1xf32> to vector<1x1x1xf32>
        %252 = vector.extract %251[0, 0, 0] : f32 from vector<1x1x1xf32>
        %cst_103 = arith.constant 8.000000e+00 : f32
        %253 = arith.cmpf oge, %252, %cst_103 : f32
        %254 = arith.select %253, %243, %234 : i32
        %c1_i32_104 = arith.constant 1 : i32
        %255 = arith.subi %243, %c1_i32_104 : i32
        %256 = arith.select %253, %236, %255 : i32
        %c10_i32 = arith.constant 10 : i32
        %257 = arith.andi %254, %256 : i32
        %258 = arith.xori %254, %256 : i32
        %c1_i32_105 = arith.constant 1 : i32
        %259 = arith.shrsi %258, %c1_i32_105 : i32
        %260 = arith.addi %257, %259 : i32
        %261 = arith.xori %254, %256 : i32
        %c1_i32_106 = arith.constant 1 : i32
        %262 = arith.andi %261, %c1_i32_106 : i32
        %263 = arith.addi %260, %262 : i32
        %264 = vector.broadcast %263 : i32 to vector<1x512xi32>
        %265 = arith.cmpi sge, %56, %264 : vector<1x512xi32>
        %cst_107 = arith.constant 1.000000e+00 : f32
        %cst_108 = arith.constant 0.000000e+00 : f32
        %266 = vector.broadcast %cst_107 : f32 to vector<1x512xf32>
        %267 = vector.broadcast %cst_108 : f32 to vector<1x512xf32>
        %268 = arith.select %265, %266, %267 : vector<1x512xi1>, vector<1x512xf32>
        %269 = vector.shape_cast %268 : vector<1x512xf32> to vector<1x1x512xf32>
        %cst_109 = arith.constant dense<0.000000e+00> : vector<1xf32>
        %270 = vector.multi_reduction <add>, %269, %cst_109 [1, 2] : vector<1x1x512xf32> to vector<1xf32>
        %271 = vector.shape_cast %270 : vector<1xf32> to vector<1x1x1xf32>
        %272 = vector.extract %271[0, 0, 0] : f32 from vector<1x1x1xf32>
        %cst_110 = arith.constant 8.000000e+00 : f32
        %273 = arith.cmpf oge, %272, %cst_110 : f32
        %274 = arith.select %273, %263, %254 : i32
        %c1_i32_111 = arith.constant 1 : i32
        %275 = arith.subi %263, %c1_i32_111 : i32
        %276 = arith.select %273, %256, %275 : i32
        %c11_i32 = arith.constant 11 : i32
        %277 = arith.andi %274, %276 : i32
        %278 = arith.xori %274, %276 : i32
        %c1_i32_112 = arith.constant 1 : i32
        %279 = arith.shrsi %278, %c1_i32_112 : i32
        %280 = arith.addi %277, %279 : i32
        %281 = arith.xori %274, %276 : i32
        %c1_i32_113 = arith.constant 1 : i32
        %282 = arith.andi %281, %c1_i32_113 : i32
        %283 = arith.addi %280, %282 : i32
        %284 = vector.broadcast %283 : i32 to vector<1x512xi32>
        %285 = arith.cmpi sge, %56, %284 : vector<1x512xi32>
        %cst_114 = arith.constant 1.000000e+00 : f32
        %cst_115 = arith.constant 0.000000e+00 : f32
        %286 = vector.broadcast %cst_114 : f32 to vector<1x512xf32>
        %287 = vector.broadcast %cst_115 : f32 to vector<1x512xf32>
        %288 = arith.select %285, %286, %287 : vector<1x512xi1>, vector<1x512xf32>
        %289 = vector.shape_cast %288 : vector<1x512xf32> to vector<1x1x512xf32>
        %cst_116 = arith.constant dense<0.000000e+00> : vector<1xf32>
        %290 = vector.multi_reduction <add>, %289, %cst_116 [1, 2] : vector<1x1x512xf32> to vector<1xf32>
        %291 = vector.shape_cast %290 : vector<1xf32> to vector<1x1x1xf32>
        %292 = vector.extract %291[0, 0, 0] : f32 from vector<1x1x1xf32>
        %cst_117 = arith.constant 8.000000e+00 : f32
        %293 = arith.cmpf oge, %292, %cst_117 : f32
        %294 = arith.select %293, %283, %274 : i32
        %c1_i32_118 = arith.constant 1 : i32
        %295 = arith.subi %283, %c1_i32_118 : i32
        %296 = arith.select %293, %276, %295 : i32
        %c12_i32 = arith.constant 12 : i32
        %297 = arith.andi %294, %296 : i32
        %298 = arith.xori %294, %296 : i32
        %c1_i32_119 = arith.constant 1 : i32
        %299 = arith.shrsi %298, %c1_i32_119 : i32
        %300 = arith.addi %297, %299 : i32
        %301 = arith.xori %294, %296 : i32
        %c1_i32_120 = arith.constant 1 : i32
        %302 = arith.andi %301, %c1_i32_120 : i32
        %303 = arith.addi %300, %302 : i32
        %304 = vector.broadcast %303 : i32 to vector<1x512xi32>
        %305 = arith.cmpi sge, %56, %304 : vector<1x512xi32>
        %cst_121 = arith.constant 1.000000e+00 : f32
        %cst_122 = arith.constant 0.000000e+00 : f32
        %306 = vector.broadcast %cst_121 : f32 to vector<1x512xf32>
        %307 = vector.broadcast %cst_122 : f32 to vector<1x512xf32>
        %308 = arith.select %305, %306, %307 : vector<1x512xi1>, vector<1x512xf32>
        %309 = vector.shape_cast %308 : vector<1x512xf32> to vector<1x1x512xf32>
        %cst_123 = arith.constant dense<0.000000e+00> : vector<1xf32>
        %310 = vector.multi_reduction <add>, %309, %cst_123 [1, 2] : vector<1x1x512xf32> to vector<1xf32>
        %311 = vector.shape_cast %310 : vector<1xf32> to vector<1x1x1xf32>
        %312 = vector.extract %311[0, 0, 0] : f32 from vector<1x1x1xf32>
        %cst_124 = arith.constant 8.000000e+00 : f32
        %313 = arith.cmpf oge, %312, %cst_124 : f32
        %314 = arith.select %313, %303, %294 : i32
        %c1_i32_125 = arith.constant 1 : i32
        %315 = arith.subi %303, %c1_i32_125 : i32
        %316 = arith.select %313, %296, %315 : i32
        %c13_i32 = arith.constant 13 : i32
        %317 = arith.andi %314, %316 : i32
        %318 = arith.xori %314, %316 : i32
        %c1_i32_126 = arith.constant 1 : i32
        %319 = arith.shrsi %318, %c1_i32_126 : i32
        %320 = arith.addi %317, %319 : i32
        %321 = arith.xori %314, %316 : i32
        %c1_i32_127 = arith.constant 1 : i32
        %322 = arith.andi %321, %c1_i32_127 : i32
        %323 = arith.addi %320, %322 : i32
        %324 = vector.broadcast %323 : i32 to vector<1x512xi32>
        %325 = arith.cmpi sge, %56, %324 : vector<1x512xi32>
        %cst_128 = arith.constant 1.000000e+00 : f32
        %cst_129 = arith.constant 0.000000e+00 : f32
        %326 = vector.broadcast %cst_128 : f32 to vector<1x512xf32>
        %327 = vector.broadcast %cst_129 : f32 to vector<1x512xf32>
        %328 = arith.select %325, %326, %327 : vector<1x512xi1>, vector<1x512xf32>
        %329 = vector.shape_cast %328 : vector<1x512xf32> to vector<1x1x512xf32>
        %cst_130 = arith.constant dense<0.000000e+00> : vector<1xf32>
        %330 = vector.multi_reduction <add>, %329, %cst_130 [1, 2] : vector<1x1x512xf32> to vector<1xf32>
        %331 = vector.shape_cast %330 : vector<1xf32> to vector<1x1x1xf32>
        %332 = vector.extract %331[0, 0, 0] : f32 from vector<1x1x1xf32>
        %cst_131 = arith.constant 8.000000e+00 : f32
        %333 = arith.cmpf oge, %332, %cst_131 : f32
        %334 = arith.select %333, %323, %314 : i32
        %c1_i32_132 = arith.constant 1 : i32
        %335 = arith.subi %323, %c1_i32_132 : i32
        %336 = arith.select %333, %316, %335 : i32
        %c14_i32 = arith.constant 14 : i32
        %337 = arith.andi %334, %336 : i32
        %338 = arith.xori %334, %336 : i32
        %c1_i32_133 = arith.constant 1 : i32
        %339 = arith.shrsi %338, %c1_i32_133 : i32
        %340 = arith.addi %337, %339 : i32
        %341 = arith.xori %334, %336 : i32
        %c1_i32_134 = arith.constant 1 : i32
        %342 = arith.andi %341, %c1_i32_134 : i32
        %343 = arith.addi %340, %342 : i32
        %344 = vector.broadcast %343 : i32 to vector<1x512xi32>
        %345 = arith.cmpi sge, %56, %344 : vector<1x512xi32>
        %cst_135 = arith.constant 1.000000e+00 : f32
        %cst_136 = arith.constant 0.000000e+00 : f32
        %346 = vector.broadcast %cst_135 : f32 to vector<1x512xf32>
        %347 = vector.broadcast %cst_136 : f32 to vector<1x512xf32>
        %348 = arith.select %345, %346, %347 : vector<1x512xi1>, vector<1x512xf32>
        %349 = vector.shape_cast %348 : vector<1x512xf32> to vector<1x1x512xf32>
        %cst_137 = arith.constant dense<0.000000e+00> : vector<1xf32>
        %350 = vector.multi_reduction <add>, %349, %cst_137 [1, 2] : vector<1x1x512xf32> to vector<1xf32>
        %351 = vector.shape_cast %350 : vector<1xf32> to vector<1x1x1xf32>
        %352 = vector.extract %351[0, 0, 0] : f32 from vector<1x1x1xf32>
        %cst_138 = arith.constant 8.000000e+00 : f32
        %353 = arith.cmpf oge, %352, %cst_138 : f32
        %354 = arith.select %353, %343, %334 : i32
        %c1_i32_139 = arith.constant 1 : i32
        %355 = arith.subi %343, %c1_i32_139 : i32
        %356 = arith.select %353, %336, %355 : i32
        %c15_i32 = arith.constant 15 : i32
        %357 = arith.andi %354, %356 : i32
        %358 = arith.xori %354, %356 : i32
        %c1_i32_140 = arith.constant 1 : i32
        %359 = arith.shrsi %358, %c1_i32_140 : i32
        %360 = arith.addi %357, %359 : i32
        %361 = arith.xori %354, %356 : i32
        %c1_i32_141 = arith.constant 1 : i32
        %362 = arith.andi %361, %c1_i32_141 : i32
        %363 = arith.addi %360, %362 : i32
        %364 = vector.broadcast %363 : i32 to vector<1x512xi32>
        %365 = arith.cmpi sge, %56, %364 : vector<1x512xi32>
        %cst_142 = arith.constant 1.000000e+00 : f32
        %cst_143 = arith.constant 0.000000e+00 : f32
        %366 = vector.broadcast %cst_142 : f32 to vector<1x512xf32>
        %367 = vector.broadcast %cst_143 : f32 to vector<1x512xf32>
        %368 = arith.select %365, %366, %367 : vector<1x512xi1>, vector<1x512xf32>
        %369 = vector.shape_cast %368 : vector<1x512xf32> to vector<1x1x512xf32>
        %cst_144 = arith.constant dense<0.000000e+00> : vector<1xf32>
        %370 = vector.multi_reduction <add>, %369, %cst_144 [1, 2] : vector<1x1x512xf32> to vector<1xf32>
        %371 = vector.shape_cast %370 : vector<1xf32> to vector<1x1x1xf32>
        %372 = vector.extract %371[0, 0, 0] : f32 from vector<1x1x1xf32>
        %cst_145 = arith.constant 8.000000e+00 : f32
        %373 = arith.cmpf oge, %372, %cst_145 : f32
        %374 = arith.select %373, %363, %354 : i32
        %c1_i32_146 = arith.constant 1 : i32
        %375 = arith.subi %363, %c1_i32_146 : i32
        %376 = arith.select %373, %356, %375 : i32
        %c16_i32 = arith.constant 16 : i32
        %377 = arith.andi %374, %376 : i32
        %378 = arith.xori %374, %376 : i32
        %c1_i32_147 = arith.constant 1 : i32
        %379 = arith.shrsi %378, %c1_i32_147 : i32
        %380 = arith.addi %377, %379 : i32
        %381 = arith.xori %374, %376 : i32
        %c1_i32_148 = arith.constant 1 : i32
        %382 = arith.andi %381, %c1_i32_148 : i32
        %383 = arith.addi %380, %382 : i32
        %384 = vector.broadcast %383 : i32 to vector<1x512xi32>
        %385 = arith.cmpi sge, %56, %384 : vector<1x512xi32>
        %cst_149 = arith.constant 1.000000e+00 : f32
        %cst_150 = arith.constant 0.000000e+00 : f32
        %386 = vector.broadcast %cst_149 : f32 to vector<1x512xf32>
        %387 = vector.broadcast %cst_150 : f32 to vector<1x512xf32>
        %388 = arith.select %385, %386, %387 : vector<1x512xi1>, vector<1x512xf32>
        %389 = vector.shape_cast %388 : vector<1x512xf32> to vector<1x1x512xf32>
        %cst_151 = arith.constant dense<0.000000e+00> : vector<1xf32>
        %390 = vector.multi_reduction <add>, %389, %cst_151 [1, 2] : vector<1x1x512xf32> to vector<1xf32>
        %391 = vector.shape_cast %390 : vector<1xf32> to vector<1x1x1xf32>
        %392 = vector.extract %391[0, 0, 0] : f32 from vector<1x1x1xf32>
        %cst_152 = arith.constant 8.000000e+00 : f32
        %393 = arith.cmpf oge, %392, %cst_152 : f32
        %394 = arith.select %393, %383, %374 : i32
        %c1_i32_153 = arith.constant 1 : i32
        %395 = arith.subi %383, %c1_i32_153 : i32
        %396 = arith.select %393, %376, %395 : i32
        %c17_i32 = arith.constant 17 : i32
        %397 = arith.andi %394, %396 : i32
        %398 = arith.xori %394, %396 : i32
        %c1_i32_154 = arith.constant 1 : i32
        %399 = arith.shrsi %398, %c1_i32_154 : i32
        %400 = arith.addi %397, %399 : i32
        %401 = arith.xori %394, %396 : i32
        %c1_i32_155 = arith.constant 1 : i32
        %402 = arith.andi %401, %c1_i32_155 : i32
        %403 = arith.addi %400, %402 : i32
        %404 = vector.broadcast %403 : i32 to vector<1x512xi32>
        %405 = arith.cmpi sge, %56, %404 : vector<1x512xi32>
        %cst_156 = arith.constant 1.000000e+00 : f32
        %cst_157 = arith.constant 0.000000e+00 : f32
        %406 = vector.broadcast %cst_156 : f32 to vector<1x512xf32>
        %407 = vector.broadcast %cst_157 : f32 to vector<1x512xf32>
        %408 = arith.select %405, %406, %407 : vector<1x512xi1>, vector<1x512xf32>
        %409 = vector.shape_cast %408 : vector<1x512xf32> to vector<1x1x512xf32>
        %cst_158 = arith.constant dense<0.000000e+00> : vector<1xf32>
        %410 = vector.multi_reduction <add>, %409, %cst_158 [1, 2] : vector<1x1x512xf32> to vector<1xf32>
        %411 = vector.shape_cast %410 : vector<1xf32> to vector<1x1x1xf32>
        %412 = vector.extract %411[0, 0, 0] : f32 from vector<1x1x1xf32>
        %cst_159 = arith.constant 8.000000e+00 : f32
        %413 = arith.cmpf oge, %412, %cst_159 : f32
        %414 = arith.select %413, %403, %394 : i32
        %c1_i32_160 = arith.constant 1 : i32
        %415 = arith.subi %403, %c1_i32_160 : i32
        %416 = arith.select %413, %396, %415 : i32
        %c18_i32 = arith.constant 18 : i32
        %417 = arith.andi %414, %416 : i32
        %418 = arith.xori %414, %416 : i32
        %c1_i32_161 = arith.constant 1 : i32
        %419 = arith.shrsi %418, %c1_i32_161 : i32
        %420 = arith.addi %417, %419 : i32
        %421 = arith.xori %414, %416 : i32
        %c1_i32_162 = arith.constant 1 : i32
        %422 = arith.andi %421, %c1_i32_162 : i32
        %423 = arith.addi %420, %422 : i32
        %424 = vector.broadcast %423 : i32 to vector<1x512xi32>
        %425 = arith.cmpi sge, %56, %424 : vector<1x512xi32>
        %cst_163 = arith.constant 1.000000e+00 : f32
        %cst_164 = arith.constant 0.000000e+00 : f32
        %426 = vector.broadcast %cst_163 : f32 to vector<1x512xf32>
        %427 = vector.broadcast %cst_164 : f32 to vector<1x512xf32>
        %428 = arith.select %425, %426, %427 : vector<1x512xi1>, vector<1x512xf32>
        %429 = vector.shape_cast %428 : vector<1x512xf32> to vector<1x1x512xf32>
        %cst_165 = arith.constant dense<0.000000e+00> : vector<1xf32>
        %430 = vector.multi_reduction <add>, %429, %cst_165 [1, 2] : vector<1x1x512xf32> to vector<1xf32>
        %431 = vector.shape_cast %430 : vector<1xf32> to vector<1x1x1xf32>
        %432 = vector.extract %431[0, 0, 0] : f32 from vector<1x1x1xf32>
        %cst_166 = arith.constant 8.000000e+00 : f32
        %433 = arith.cmpf oge, %432, %cst_166 : f32
        %434 = arith.select %433, %423, %414 : i32
        %c1_i32_167 = arith.constant 1 : i32
        %435 = arith.subi %423, %c1_i32_167 : i32
        %436 = arith.select %433, %416, %435 : i32
        %c19_i32 = arith.constant 19 : i32
        %437 = arith.andi %434, %436 : i32
        %438 = arith.xori %434, %436 : i32
        %c1_i32_168 = arith.constant 1 : i32
        %439 = arith.shrsi %438, %c1_i32_168 : i32
        %440 = arith.addi %437, %439 : i32
        %441 = arith.xori %434, %436 : i32
        %c1_i32_169 = arith.constant 1 : i32
        %442 = arith.andi %441, %c1_i32_169 : i32
        %443 = arith.addi %440, %442 : i32
        %444 = vector.broadcast %443 : i32 to vector<1x512xi32>
        %445 = arith.cmpi sge, %56, %444 : vector<1x512xi32>
        %cst_170 = arith.constant 1.000000e+00 : f32
        %cst_171 = arith.constant 0.000000e+00 : f32
        %446 = vector.broadcast %cst_170 : f32 to vector<1x512xf32>
        %447 = vector.broadcast %cst_171 : f32 to vector<1x512xf32>
        %448 = arith.select %445, %446, %447 : vector<1x512xi1>, vector<1x512xf32>
        %449 = vector.shape_cast %448 : vector<1x512xf32> to vector<1x1x512xf32>
        %cst_172 = arith.constant dense<0.000000e+00> : vector<1xf32>
        %450 = vector.multi_reduction <add>, %449, %cst_172 [1, 2] : vector<1x1x512xf32> to vector<1xf32>
        %451 = vector.shape_cast %450 : vector<1xf32> to vector<1x1x1xf32>
        %452 = vector.extract %451[0, 0, 0] : f32 from vector<1x1x1xf32>
        %cst_173 = arith.constant 8.000000e+00 : f32
        %453 = arith.cmpf oge, %452, %cst_173 : f32
        %454 = arith.select %453, %443, %434 : i32
        %c1_i32_174 = arith.constant 1 : i32
        %455 = arith.subi %443, %c1_i32_174 : i32
        %456 = arith.select %453, %436, %455 : i32
        %c20_i32 = arith.constant 20 : i32
        %457 = arith.andi %454, %456 : i32
        %458 = arith.xori %454, %456 : i32
        %c1_i32_175 = arith.constant 1 : i32
        %459 = arith.shrsi %458, %c1_i32_175 : i32
        %460 = arith.addi %457, %459 : i32
        %461 = arith.xori %454, %456 : i32
        %c1_i32_176 = arith.constant 1 : i32
        %462 = arith.andi %461, %c1_i32_176 : i32
        %463 = arith.addi %460, %462 : i32
        %464 = vector.broadcast %463 : i32 to vector<1x512xi32>
        %465 = arith.cmpi sge, %56, %464 : vector<1x512xi32>
        %cst_177 = arith.constant 1.000000e+00 : f32
        %cst_178 = arith.constant 0.000000e+00 : f32
        %466 = vector.broadcast %cst_177 : f32 to vector<1x512xf32>
        %467 = vector.broadcast %cst_178 : f32 to vector<1x512xf32>
        %468 = arith.select %465, %466, %467 : vector<1x512xi1>, vector<1x512xf32>
        %469 = vector.shape_cast %468 : vector<1x512xf32> to vector<1x1x512xf32>
        %cst_179 = arith.constant dense<0.000000e+00> : vector<1xf32>
        %470 = vector.multi_reduction <add>, %469, %cst_179 [1, 2] : vector<1x1x512xf32> to vector<1xf32>
        %471 = vector.shape_cast %470 : vector<1xf32> to vector<1x1x1xf32>
        %472 = vector.extract %471[0, 0, 0] : f32 from vector<1x1x1xf32>
        %cst_180 = arith.constant 8.000000e+00 : f32
        %473 = arith.cmpf oge, %472, %cst_180 : f32
        %474 = arith.select %473, %463, %454 : i32
        %c1_i32_181 = arith.constant 1 : i32
        %475 = arith.subi %463, %c1_i32_181 : i32
        %476 = arith.select %473, %456, %475 : i32
        %c21_i32 = arith.constant 21 : i32
        %477 = arith.andi %474, %476 : i32
        %478 = arith.xori %474, %476 : i32
        %c1_i32_182 = arith.constant 1 : i32
        %479 = arith.shrsi %478, %c1_i32_182 : i32
        %480 = arith.addi %477, %479 : i32
        %481 = arith.xori %474, %476 : i32
        %c1_i32_183 = arith.constant 1 : i32
        %482 = arith.andi %481, %c1_i32_183 : i32
        %483 = arith.addi %480, %482 : i32
        %484 = vector.broadcast %483 : i32 to vector<1x512xi32>
        %485 = arith.cmpi sge, %56, %484 : vector<1x512xi32>
        %cst_184 = arith.constant 1.000000e+00 : f32
        %cst_185 = arith.constant 0.000000e+00 : f32
        %486 = vector.broadcast %cst_184 : f32 to vector<1x512xf32>
        %487 = vector.broadcast %cst_185 : f32 to vector<1x512xf32>
        %488 = arith.select %485, %486, %487 : vector<1x512xi1>, vector<1x512xf32>
        %489 = vector.shape_cast %488 : vector<1x512xf32> to vector<1x1x512xf32>
        %cst_186 = arith.constant dense<0.000000e+00> : vector<1xf32>
        %490 = vector.multi_reduction <add>, %489, %cst_186 [1, 2] : vector<1x1x512xf32> to vector<1xf32>
        %491 = vector.shape_cast %490 : vector<1xf32> to vector<1x1x1xf32>
        %492 = vector.extract %491[0, 0, 0] : f32 from vector<1x1x1xf32>
        %cst_187 = arith.constant 8.000000e+00 : f32
        %493 = arith.cmpf oge, %492, %cst_187 : f32
        %494 = arith.select %493, %483, %474 : i32
        %c1_i32_188 = arith.constant 1 : i32
        %495 = arith.subi %483, %c1_i32_188 : i32
        %496 = arith.select %493, %476, %495 : i32
        %c22_i32 = arith.constant 22 : i32
        %497 = arith.andi %494, %496 : i32
        %498 = arith.xori %494, %496 : i32
        %c1_i32_189 = arith.constant 1 : i32
        %499 = arith.shrsi %498, %c1_i32_189 : i32
        %500 = arith.addi %497, %499 : i32
        %501 = arith.xori %494, %496 : i32
        %c1_i32_190 = arith.constant 1 : i32
        %502 = arith.andi %501, %c1_i32_190 : i32
        %503 = arith.addi %500, %502 : i32
        %504 = vector.broadcast %503 : i32 to vector<1x512xi32>
        %505 = arith.cmpi sge, %56, %504 : vector<1x512xi32>
        %cst_191 = arith.constant 1.000000e+00 : f32
        %cst_192 = arith.constant 0.000000e+00 : f32
        %506 = vector.broadcast %cst_191 : f32 to vector<1x512xf32>
        %507 = vector.broadcast %cst_192 : f32 to vector<1x512xf32>
        %508 = arith.select %505, %506, %507 : vector<1x512xi1>, vector<1x512xf32>
        %509 = vector.shape_cast %508 : vector<1x512xf32> to vector<1x1x512xf32>
        %cst_193 = arith.constant dense<0.000000e+00> : vector<1xf32>
        %510 = vector.multi_reduction <add>, %509, %cst_193 [1, 2] : vector<1x1x512xf32> to vector<1xf32>
        %511 = vector.shape_cast %510 : vector<1xf32> to vector<1x1x1xf32>
        %512 = vector.extract %511[0, 0, 0] : f32 from vector<1x1x1xf32>
        %cst_194 = arith.constant 8.000000e+00 : f32
        %513 = arith.cmpf oge, %512, %cst_194 : f32
        %514 = arith.select %513, %503, %494 : i32
        %c1_i32_195 = arith.constant 1 : i32
        %515 = arith.subi %503, %c1_i32_195 : i32
        %516 = arith.select %513, %496, %515 : i32
        %c23_i32 = arith.constant 23 : i32
        %517 = arith.andi %514, %516 : i32
        %518 = arith.xori %514, %516 : i32
        %c1_i32_196 = arith.constant 1 : i32
        %519 = arith.shrsi %518, %c1_i32_196 : i32
        %520 = arith.addi %517, %519 : i32
        %521 = arith.xori %514, %516 : i32
        %c1_i32_197 = arith.constant 1 : i32
        %522 = arith.andi %521, %c1_i32_197 : i32
        %523 = arith.addi %520, %522 : i32
        %524 = vector.broadcast %523 : i32 to vector<1x512xi32>
        %525 = arith.cmpi sge, %56, %524 : vector<1x512xi32>
        %cst_198 = arith.constant 1.000000e+00 : f32
        %cst_199 = arith.constant 0.000000e+00 : f32
        %526 = vector.broadcast %cst_198 : f32 to vector<1x512xf32>
        %527 = vector.broadcast %cst_199 : f32 to vector<1x512xf32>
        %528 = arith.select %525, %526, %527 : vector<1x512xi1>, vector<1x512xf32>
        %529 = vector.shape_cast %528 : vector<1x512xf32> to vector<1x1x512xf32>
        %cst_200 = arith.constant dense<0.000000e+00> : vector<1xf32>
        %530 = vector.multi_reduction <add>, %529, %cst_200 [1, 2] : vector<1x1x512xf32> to vector<1xf32>
        %531 = vector.shape_cast %530 : vector<1xf32> to vector<1x1x1xf32>
        %532 = vector.extract %531[0, 0, 0] : f32 from vector<1x1x1xf32>
        %cst_201 = arith.constant 8.000000e+00 : f32
        %533 = arith.cmpf oge, %532, %cst_201 : f32
        %534 = arith.select %533, %523, %514 : i32
        %c1_i32_202 = arith.constant 1 : i32
        %535 = arith.subi %523, %c1_i32_202 : i32
        %536 = arith.select %533, %516, %535 : i32
        %c24_i32 = arith.constant 24 : i32
        %537 = arith.andi %534, %536 : i32
        %538 = arith.xori %534, %536 : i32
        %c1_i32_203 = arith.constant 1 : i32
        %539 = arith.shrsi %538, %c1_i32_203 : i32
        %540 = arith.addi %537, %539 : i32
        %541 = arith.xori %534, %536 : i32
        %c1_i32_204 = arith.constant 1 : i32
        %542 = arith.andi %541, %c1_i32_204 : i32
        %543 = arith.addi %540, %542 : i32
        %544 = vector.broadcast %543 : i32 to vector<1x512xi32>
        %545 = arith.cmpi sge, %56, %544 : vector<1x512xi32>
        %cst_205 = arith.constant 1.000000e+00 : f32
        %cst_206 = arith.constant 0.000000e+00 : f32
        %546 = vector.broadcast %cst_205 : f32 to vector<1x512xf32>
        %547 = vector.broadcast %cst_206 : f32 to vector<1x512xf32>
        %548 = arith.select %545, %546, %547 : vector<1x512xi1>, vector<1x512xf32>
        %549 = vector.shape_cast %548 : vector<1x512xf32> to vector<1x1x512xf32>
        %cst_207 = arith.constant dense<0.000000e+00> : vector<1xf32>
        %550 = vector.multi_reduction <add>, %549, %cst_207 [1, 2] : vector<1x1x512xf32> to vector<1xf32>
        %551 = vector.shape_cast %550 : vector<1xf32> to vector<1x1x1xf32>
        %552 = vector.extract %551[0, 0, 0] : f32 from vector<1x1x1xf32>
        %cst_208 = arith.constant 8.000000e+00 : f32
        %553 = arith.cmpf oge, %552, %cst_208 : f32
        %554 = arith.select %553, %543, %534 : i32
        %c1_i32_209 = arith.constant 1 : i32
        %555 = arith.subi %543, %c1_i32_209 : i32
        %556 = arith.select %553, %536, %555 : i32
        %c25_i32 = arith.constant 25 : i32
        %557 = arith.andi %554, %556 : i32
        %558 = arith.xori %554, %556 : i32
        %c1_i32_210 = arith.constant 1 : i32
        %559 = arith.shrsi %558, %c1_i32_210 : i32
        %560 = arith.addi %557, %559 : i32
        %561 = arith.xori %554, %556 : i32
        %c1_i32_211 = arith.constant 1 : i32
        %562 = arith.andi %561, %c1_i32_211 : i32
        %563 = arith.addi %560, %562 : i32
        %564 = vector.broadcast %563 : i32 to vector<1x512xi32>
        %565 = arith.cmpi sge, %56, %564 : vector<1x512xi32>
        %cst_212 = arith.constant 1.000000e+00 : f32
        %cst_213 = arith.constant 0.000000e+00 : f32
        %566 = vector.broadcast %cst_212 : f32 to vector<1x512xf32>
        %567 = vector.broadcast %cst_213 : f32 to vector<1x512xf32>
        %568 = arith.select %565, %566, %567 : vector<1x512xi1>, vector<1x512xf32>
        %569 = vector.shape_cast %568 : vector<1x512xf32> to vector<1x1x512xf32>
        %cst_214 = arith.constant dense<0.000000e+00> : vector<1xf32>
        %570 = vector.multi_reduction <add>, %569, %cst_214 [1, 2] : vector<1x1x512xf32> to vector<1xf32>
        %571 = vector.shape_cast %570 : vector<1xf32> to vector<1x1x1xf32>
        %572 = vector.extract %571[0, 0, 0] : f32 from vector<1x1x1xf32>
        %cst_215 = arith.constant 8.000000e+00 : f32
        %573 = arith.cmpf oge, %572, %cst_215 : f32
        %574 = arith.select %573, %563, %554 : i32
        %c1_i32_216 = arith.constant 1 : i32
        %575 = arith.subi %563, %c1_i32_216 : i32
        %576 = arith.select %573, %556, %575 : i32
        %c26_i32 = arith.constant 26 : i32
        %577 = arith.andi %574, %576 : i32
        %578 = arith.xori %574, %576 : i32
        %c1_i32_217 = arith.constant 1 : i32
        %579 = arith.shrsi %578, %c1_i32_217 : i32
        %580 = arith.addi %577, %579 : i32
        %581 = arith.xori %574, %576 : i32
        %c1_i32_218 = arith.constant 1 : i32
        %582 = arith.andi %581, %c1_i32_218 : i32
        %583 = arith.addi %580, %582 : i32
        %584 = vector.broadcast %583 : i32 to vector<1x512xi32>
        %585 = arith.cmpi sge, %56, %584 : vector<1x512xi32>
        %cst_219 = arith.constant 1.000000e+00 : f32
        %cst_220 = arith.constant 0.000000e+00 : f32
        %586 = vector.broadcast %cst_219 : f32 to vector<1x512xf32>
        %587 = vector.broadcast %cst_220 : f32 to vector<1x512xf32>
        %588 = arith.select %585, %586, %587 : vector<1x512xi1>, vector<1x512xf32>
        %589 = vector.shape_cast %588 : vector<1x512xf32> to vector<1x1x512xf32>
        %cst_221 = arith.constant dense<0.000000e+00> : vector<1xf32>
        %590 = vector.multi_reduction <add>, %589, %cst_221 [1, 2] : vector<1x1x512xf32> to vector<1xf32>
        %591 = vector.shape_cast %590 : vector<1xf32> to vector<1x1x1xf32>
        %592 = vector.extract %591[0, 0, 0] : f32 from vector<1x1x1xf32>
        %cst_222 = arith.constant 8.000000e+00 : f32
        %593 = arith.cmpf oge, %592, %cst_222 : f32
        %594 = arith.select %593, %583, %574 : i32
        %c1_i32_223 = arith.constant 1 : i32
        %595 = arith.subi %583, %c1_i32_223 : i32
        %596 = arith.select %593, %576, %595 : i32
        %c27_i32 = arith.constant 27 : i32
        %597 = arith.andi %594, %596 : i32
        %598 = arith.xori %594, %596 : i32
        %c1_i32_224 = arith.constant 1 : i32
        %599 = arith.shrsi %598, %c1_i32_224 : i32
        %600 = arith.addi %597, %599 : i32
        %601 = arith.xori %594, %596 : i32
        %c1_i32_225 = arith.constant 1 : i32
        %602 = arith.andi %601, %c1_i32_225 : i32
        %603 = arith.addi %600, %602 : i32
        %604 = vector.broadcast %603 : i32 to vector<1x512xi32>
        %605 = arith.cmpi sge, %56, %604 : vector<1x512xi32>
        %cst_226 = arith.constant 1.000000e+00 : f32
        %cst_227 = arith.constant 0.000000e+00 : f32
        %606 = vector.broadcast %cst_226 : f32 to vector<1x512xf32>
        %607 = vector.broadcast %cst_227 : f32 to vector<1x512xf32>
        %608 = arith.select %605, %606, %607 : vector<1x512xi1>, vector<1x512xf32>
        %609 = vector.shape_cast %608 : vector<1x512xf32> to vector<1x1x512xf32>
        %cst_228 = arith.constant dense<0.000000e+00> : vector<1xf32>
        %610 = vector.multi_reduction <add>, %609, %cst_228 [1, 2] : vector<1x1x512xf32> to vector<1xf32>
        %611 = vector.shape_cast %610 : vector<1xf32> to vector<1x1x1xf32>
        %612 = vector.extract %611[0, 0, 0] : f32 from vector<1x1x1xf32>
        %cst_229 = arith.constant 8.000000e+00 : f32
        %613 = arith.cmpf oge, %612, %cst_229 : f32
        %614 = arith.select %613, %603, %594 : i32
        %c1_i32_230 = arith.constant 1 : i32
        %615 = arith.subi %603, %c1_i32_230 : i32
        %616 = arith.select %613, %596, %615 : i32
        %c28_i32 = arith.constant 28 : i32
        %617 = arith.andi %614, %616 : i32
        %618 = arith.xori %614, %616 : i32
        %c1_i32_231 = arith.constant 1 : i32
        %619 = arith.shrsi %618, %c1_i32_231 : i32
        %620 = arith.addi %617, %619 : i32
        %621 = arith.xori %614, %616 : i32
        %c1_i32_232 = arith.constant 1 : i32
        %622 = arith.andi %621, %c1_i32_232 : i32
        %623 = arith.addi %620, %622 : i32
        %624 = vector.broadcast %623 : i32 to vector<1x512xi32>
        %625 = arith.cmpi sge, %56, %624 : vector<1x512xi32>
        %cst_233 = arith.constant 1.000000e+00 : f32
        %cst_234 = arith.constant 0.000000e+00 : f32
        %626 = vector.broadcast %cst_233 : f32 to vector<1x512xf32>
        %627 = vector.broadcast %cst_234 : f32 to vector<1x512xf32>
        %628 = arith.select %625, %626, %627 : vector<1x512xi1>, vector<1x512xf32>
        %629 = vector.shape_cast %628 : vector<1x512xf32> to vector<1x1x512xf32>
        %cst_235 = arith.constant dense<0.000000e+00> : vector<1xf32>
        %630 = vector.multi_reduction <add>, %629, %cst_235 [1, 2] : vector<1x1x512xf32> to vector<1xf32>
        %631 = vector.shape_cast %630 : vector<1xf32> to vector<1x1x1xf32>
        %632 = vector.extract %631[0, 0, 0] : f32 from vector<1x1x1xf32>
        %cst_236 = arith.constant 8.000000e+00 : f32
        %633 = arith.cmpf oge, %632, %cst_236 : f32
        %634 = arith.select %633, %623, %614 : i32
        %c1_i32_237 = arith.constant 1 : i32
        %635 = arith.subi %623, %c1_i32_237 : i32
        %636 = arith.select %633, %616, %635 : i32
        %c29_i32 = arith.constant 29 : i32
        %637 = arith.andi %634, %636 : i32
        %638 = arith.xori %634, %636 : i32
        %c1_i32_238 = arith.constant 1 : i32
        %639 = arith.shrsi %638, %c1_i32_238 : i32
        %640 = arith.addi %637, %639 : i32
        %641 = arith.xori %634, %636 : i32
        %c1_i32_239 = arith.constant 1 : i32
        %642 = arith.andi %641, %c1_i32_239 : i32
        %643 = arith.addi %640, %642 : i32
        %644 = vector.broadcast %643 : i32 to vector<1x512xi32>
        %645 = arith.cmpi sge, %56, %644 : vector<1x512xi32>
        %cst_240 = arith.constant 1.000000e+00 : f32
        %cst_241 = arith.constant 0.000000e+00 : f32
        %646 = vector.broadcast %cst_240 : f32 to vector<1x512xf32>
        %647 = vector.broadcast %cst_241 : f32 to vector<1x512xf32>
        %648 = arith.select %645, %646, %647 : vector<1x512xi1>, vector<1x512xf32>
        %649 = vector.shape_cast %648 : vector<1x512xf32> to vector<1x1x512xf32>
        %cst_242 = arith.constant dense<0.000000e+00> : vector<1xf32>
        %650 = vector.multi_reduction <add>, %649, %cst_242 [1, 2] : vector<1x1x512xf32> to vector<1xf32>
        %651 = vector.shape_cast %650 : vector<1xf32> to vector<1x1x1xf32>
        %652 = vector.extract %651[0, 0, 0] : f32 from vector<1x1x1xf32>
        %cst_243 = arith.constant 8.000000e+00 : f32
        %653 = arith.cmpf oge, %652, %cst_243 : f32
        %654 = arith.select %653, %643, %634 : i32
        %c1_i32_244 = arith.constant 1 : i32
        %655 = arith.subi %643, %c1_i32_244 : i32
        %656 = arith.select %653, %636, %655 : i32
        %c30_i32 = arith.constant 30 : i32
        %657 = arith.andi %654, %656 : i32
        %658 = arith.xori %654, %656 : i32
        %c1_i32_245 = arith.constant 1 : i32
        %659 = arith.shrsi %658, %c1_i32_245 : i32
        %660 = arith.addi %657, %659 : i32
        %661 = arith.xori %654, %656 : i32
        %c1_i32_246 = arith.constant 1 : i32
        %662 = arith.andi %661, %c1_i32_246 : i32
        %663 = arith.addi %660, %662 : i32
        %664 = vector.broadcast %663 : i32 to vector<1x512xi32>
        %665 = arith.cmpi sge, %56, %664 : vector<1x512xi32>
        %cst_247 = arith.constant 1.000000e+00 : f32
        %cst_248 = arith.constant 0.000000e+00 : f32
        %666 = vector.broadcast %cst_247 : f32 to vector<1x512xf32>
        %667 = vector.broadcast %cst_248 : f32 to vector<1x512xf32>
        %668 = arith.select %665, %666, %667 : vector<1x512xi1>, vector<1x512xf32>
        %669 = vector.shape_cast %668 : vector<1x512xf32> to vector<1x1x512xf32>
        %cst_249 = arith.constant dense<0.000000e+00> : vector<1xf32>
        %670 = vector.multi_reduction <add>, %669, %cst_249 [1, 2] : vector<1x1x512xf32> to vector<1xf32>
        %671 = vector.shape_cast %670 : vector<1xf32> to vector<1x1x1xf32>
        %672 = vector.extract %671[0, 0, 0] : f32 from vector<1x1x1xf32>
        %cst_250 = arith.constant 8.000000e+00 : f32
        %673 = arith.cmpf oge, %672, %cst_250 : f32
        %674 = arith.select %673, %663, %654 : i32
        %c1_i32_251 = arith.constant 1 : i32
        %675 = arith.subi %663, %c1_i32_251 : i32
        %676 = arith.select %673, %656, %675 : i32
        %c31_i32 = arith.constant 31 : i32
        %677 = arith.andi %674, %676 : i32
        %678 = arith.xori %674, %676 : i32
        %c1_i32_252 = arith.constant 1 : i32
        %679 = arith.shrsi %678, %c1_i32_252 : i32
        %680 = arith.addi %677, %679 : i32
        %681 = arith.xori %674, %676 : i32
        %c1_i32_253 = arith.constant 1 : i32
        %682 = arith.andi %681, %c1_i32_253 : i32
        %683 = arith.addi %680, %682 : i32
        %684 = vector.broadcast %683 : i32 to vector<1x512xi32>
        %685 = arith.cmpi sge, %56, %684 : vector<1x512xi32>
        %cst_254 = arith.constant 1.000000e+00 : f32
        %cst_255 = arith.constant 0.000000e+00 : f32
        %686 = vector.broadcast %cst_254 : f32 to vector<1x512xf32>
        %687 = vector.broadcast %cst_255 : f32 to vector<1x512xf32>
        %688 = arith.select %685, %686, %687 : vector<1x512xi1>, vector<1x512xf32>
        %689 = vector.shape_cast %688 : vector<1x512xf32> to vector<1x1x512xf32>
        %cst_256 = arith.constant dense<0.000000e+00> : vector<1xf32>
        %690 = vector.multi_reduction <add>, %689, %cst_256 [1, 2] : vector<1x1x512xf32> to vector<1xf32>
        %691 = vector.shape_cast %690 : vector<1xf32> to vector<1x1x1xf32>
        %692 = vector.extract %691[0, 0, 0] : f32 from vector<1x1x1xf32>
        %cst_257 = arith.constant 8.000000e+00 : f32
        %693 = arith.cmpf oge, %692, %cst_257 : f32
        %694 = arith.select %693, %683, %674 : i32
        %c1_i32_258 = arith.constant 1 : i32
        %695 = arith.subi %683, %c1_i32_258 : i32
        %696 = arith.select %693, %676, %695 : i32
        %697 = vector.broadcast %694 : i32 to vector<1x512xi32>
        %698 = arith.cmpi slt, %56, %697 : vector<1x512xi32>
        %cst_259 = arith.constant 0xFF800000 : f32
        %699 = vector.broadcast %cst_259 : f32 to vector<1x512xf32>
        %700 = arith.select %698, %699, %50 : vector<1x512xi1>, vector<1x512xf32>
        %701 = arith.index_cast %arg10 : i32 to index
        %c0_260 = arith.constant 0 : index
        %702 = vector.load %arg3[%701, %c0_260] : memref<6x512xf32, #tpu.memory_space<vmem>>, vector<1x512xf32>
        %703 = arith.addf %700, %702 : vector<1x512xf32>
        %704 = vector.shape_cast %703 : vector<1x512xf32> to vector<1x1x512xf32>
        %cst_261 = arith.constant dense<0xFF800000> : vector<1xf32>
        %705 = vector.multi_reduction <maximumf>, %704, %cst_261 [1, 2] : vector<1x1x512xf32> to vector<1xf32>
        %706 = vector.shape_cast %705 : vector<1xf32> to vector<1x1x1xf32>
        %707 = vector.extract %706[0, 0, 0] : f32 from vector<1x1x1xf32>
        %708 = vector.broadcast %707 : f32 to vector<1x512xf32>
        %709 = arith.cmpf oeq, %703, %708 : vector<1x512xf32>
        %cst_262 = arith.constant 5.120000e+02 : f32
        %710 = vector.broadcast %cst_262 : f32 to vector<1x512xf32>
        %711 = arith.select %709, %1, %710 : vector<1x512xi1>, vector<1x512xf32>
        %712 = vector.shape_cast %711 : vector<1x512xf32> to vector<1x1x512xf32>
        %cst_263 = arith.constant dense<0x7F800000> : vector<1xf32>
        %713 = vector.multi_reduction <minimumf>, %712, %cst_263 [1, 2] : vector<1x1x512xf32> to vector<1xf32>
        %714 = vector.shape_cast %713 : vector<1xf32> to vector<1x1x1xf32>
        %715 = vector.extract %714[0, 0, 0] : f32 from vector<1x1x1xf32>
        %716 = arith.fptosi %715 : f32 to i32
        %717 = arith.select %43, %716, %19 : i32
        %c0_264 = arith.constant 0 : index
        %718 = memref.load %arg8[%c0_264] : memref<1xi32, #tpu.memory_space<smem>>
        memref.store %717, %arg8[%c0_264] : memref<1xi32, #tpu.memory_space<smem>>
        %c1_i32_265 = arith.constant 1 : i32
        %719 = arith.subi %c1_i32_265, %44 : i32
        %c0_266 = arith.constant 0 : index
        %720 = memref.load %arg9[%c0_266] : memref<1xi32, #tpu.memory_space<smem>>
        memref.store %719, %arg9[%c0_266] : memref<1xi32, #tpu.memory_space<smem>>
        %721 = vector.broadcast %717 : i32 to vector<1x512xi32>
        %722 = arith.cmpi eq, %0, %721 : vector<1x512xi32>
        %723 = vector.broadcast %43 : i1 to vector<1x512xi1>
        %724 = arith.andi %723, %722 : vector<1x512xi1>
        %c0_267 = arith.constant 0 : index
        %c0_268 = arith.constant 0 : index
        %725 = vector.load %arg7[%c0_267, %c0_268] : memref<1x512xf32, #tpu.memory_space<vmem>>, vector<1x512xf32>
        %cst_269 = arith.constant 1.000000e+00 : f32
        %726 = vector.broadcast %cst_269 : f32 to vector<1x512xf32>
        %727 = arith.select %724, %726, %725 : vector<1x512xi1>, vector<1x512xf32>
        %c0_270 = arith.constant 0 : index
        %c0_271 = arith.constant 0 : index
        %728 = vector.load %arg7[%c0_270, %c0_271] : memref<1x512xf32, #tpu.memory_space<vmem>>, vector<1x512xf32>
        tpu.vector_store %arg7[%c0_270, %c0_271], %727 {strides = array<i32>} : memref<1x512xf32, #tpu.memory_space<vmem>>, vector<1x512xf32>,
        %729 = arith.index_cast %arg10 : i32 to index
        %c0_272 = arith.constant 0 : index
        %730 = vector.load %arg4[%729, %c0_272] : memref<6x512xf32, #tpu.memory_space<vmem>>, vector<1x512xf32>
        tpu.vector_store %arg4[%729, %c0_272], %700 {strides = array<i32>} : memref<6x512xf32, #tpu.memory_space<vmem>>, vector<1x512xf32>,
        %731 = arith.index_cast %arg10 : i32 to index
        %732 = memref.load %arg5[%731] : memref<6xi32, #tpu.memory_space<smem>>
        memref.store %717, %arg5[%731] : memref<6xi32, #tpu.memory_space<smem>>
        %733 = arith.index_cast %arg10 : i32 to index
        %734 = memref.load %arg6[%733] : memref<6xi32, #tpu.memory_space<smem>>
        memref.store %44, %arg6[%733] : memref<6xi32, #tpu.memory_space<smem>>
      } else {
      }
      %c0_i32_12 = arith.constant 0 : i32
      %16 = arith.cmpi ne, %12, %c0_i32_12 : i32
      %17 = arith.extui %16 : i1 to i32
      %c0_i32_13 = arith.constant 0 : i32
      %18 = arith.cmpi ne, %17, %c0_i32_13 : i32
      scf.if %18 {
        %c0_14 = arith.constant 0 : index
        %19 = memref.load %arg8[%c0_14] : memref<1xi32, #tpu.memory_space<smem>>
        %20 = arith.index_cast %arg10 : i32 to index
        %21 = memref.load %arg5[%20] : memref<6xi32, #tpu.memory_space<smem>>
        memref.store %19, %arg5[%20] : memref<6xi32, #tpu.memory_space<smem>>
        %c0_i32_15 = arith.constant 0 : i32
        %22 = arith.index_cast %arg10 : i32 to index
        %23 = memref.load %arg6[%22] : memref<6xi32, #tpu.memory_space<smem>>
        memref.store %c0_i32_15, %arg6[%22] : memref<6xi32, #tpu.memory_space<smem>>
      } else {
      }
    }
    %c6_i32_8 = arith.constant 6 : i32
    return
  }
}

</mosaic_0001>

<llo_original>
// kernel: generate.1
$region0: #{generate.1}
  #allocation0 [shape = 'u32[]', space=smem, size = 0x4, offset = 0x4, fixed_abs, tag = 'smem constant byte address 0x4 - core index']
  #allocation1 [shape = 'u32[144,128]{1,0:T(1,128)}', space=vmem, size = 0x12000, scoped, tag = 'internal scratch']
  #allocation2 [shape = 'f32[1,512]{1,0:T(1,128)}', space=vmem, size = 0x800, scoped, tag = 'scratch operand']
  #allocation3 [shape = 's32[1]{0:T(128)}', space=smem, size = 0x200, scoped, tag = 'scratch operand']
  #allocation4 [shape = 's32[1]{0:T(128)}', space=smem, size = 0x200, scoped, tag = 'scratch operand']
  %s0 = inlined_call_operand.hbm [shape: f32[1,128], index: 0, kind: input, shape index: {}]
  %s1 = inlined_call_operand.hbm [shape: f32[512,128], index: 1, kind: input, shape index: {}]
  %s2 = inlined_call_operand.hbm [shape: bf16[128,512], index: 2, kind: input, shape index: {}]
  %s3 = inlined_call_operand.hbm [shape: f32[6,512], index: 3, kind: input, shape index: {}]
  %s4 = inlined_call_operand.hbm [shape: f32[6,512], index: 4, kind: output, shape index: {0}]
  %s5 = inlined_call_operand.hbm [shape: s32[6], index: 5, kind: output, shape index: {1}]
  %s6 = inlined_call_operand.hbm [shape: s32[6], index: 6, kind: output, shape index: {2}]
  %7 = xla_tuple %s4, %s5, %s6
  %s8 = sld [smem:[#allocation0]]
  $region73: #{generate.1} parent=0
    _
  %s10 = ssub.s32 1, %s8
  %s11 = scalar_select 0, %s10, %s8
  $region1: #{generate.1} parent=0
    #allocation5 [shape = 'u8[512]{0}', space=vmem, size = 0x400, scoped, tag = 'input window, operand 0, single buffered']
    #allocation6 [shape = 's32[1]{0}', space=sflag, size = 0x4, scoped, tag = 'scoped memory for generate.1']
    #allocation7 [shape = 's32[1]{0}', space=sflag, size = 0x4, scoped, tag = 'scoped memory for generate.1']
    #allocation8 [shape = 's32[1]{0}', space=sflag, size = 0x4, scoped, tag = 'scoped memory for generate.1']
    #allocation9 [shape = 'u8[262144]{0}', space=vmem, size = 0x40000, scoped, tag = 'input window, operand 1, single buffered']
    #allocation10 [shape = 's32[1]{0}', space=sflag, size = 0x4, scoped, tag = 'scoped memory for generate.1']
    #allocation11 [shape = 'u8[131072]{0}', space=vmem, size = 0x20000, scoped, tag = 'input window, operand 2, single buffered']
    #allocation12 [shape = 'u8[16384]{0}', space=vmem, size = 0x4000, scoped, tag = 'input window, operand 3, single buffered']
    #allocation13 [shape = 's32[1]{0}', space=sflag, size = 0x4, scoped, tag = 'scoped memory for generate.1']
    #allocation14 [shape = 'u8[16384]{0}', space=vmem, size = 0x4000, scoped, tag = 'output window, operand 0, single buffered']
    #allocation15 [shape = 'u8[512]{0}', space=smem, size = 0x200, scoped, tag = 'output window, operand 1, single buffered']
    #allocation16 [shape = 'u8[512]{0}', space=smem, size = 0x200, scoped, tag = 'output window, operand 2, single buffered']
    #allocation17 [shape = 's32[1]{0}', space=sflag, size = 0x4, scoped, tag = 'scoped memory for generate.1']
    %12 = vsyncpa [#allocation6], 0
    %13 = vsyncpa [#allocation10], 0
    %14 = vsyncpa [#allocation13], 0
    %15 = vsyncpa [#allocation7], 0
    %16 = vsyncpa [#allocation8], 0
    %17 = vsyncpa [#allocation17], 0
    // Predicated region
    $region2: #{generate.1} parent=1 // pred_check
      _
    $region3: #{generate.1} parent=1 // pred_check_branch
      %19 = sbr.rel (0) target = $region5
    $region4: #{generate.1} parent=1 // pred_region
      %s21 = ssub.s32 16, 16
      %22 = vsyncadd [#allocation6], %s21
      %s24 = sshll.u32 [#allocation5], 4
      %s25 = int_to_ptr.vmem [resolvable:$true] %s24
      %27 = dma.hbm_to_vmem [thread:$0]  %s0, 16, %s25, [#allocation6]
    $region5: #{generate.1} parent=1 // pred_fallthru
      _
    // Predicated region
    $region6: #{generate.1} parent=1 // pred_check
      _
    $region7: #{generate.1} parent=1 // pred_check_branch
      %29 = sbr.rel (0) target = $region9
    $region8: #{generate.1} parent=1 // pred_region
      %s31 = ssub.s32 8192, 8192
      %32 = vsyncadd [#allocation10], %s31
      %s33 = sshll.u32 [#allocation9], 4
      %s34 = int_to_ptr.vmem [resolvable:$true] %s33
      %39 = dma.hbm_to_vmem [thread:$0]  %s1, 8192, %s34, [#allocation10], 128, 128, 8
    $region9: #{generate.1} parent=1 // pred_fallthru
      _
    // Predicated region
    $region10: #{generate.1} parent=1 // pred_check
      _
    $region11: #{generate.1} parent=1 // pred_check_branch
      %41 = sbr.rel (0) target = $region13
    $region12: #{generate.1} parent=1 // pred_region
      %s43 = ssub.s32 4096, 4096
      %44 = vsyncadd [#allocation10], %s43
      %s45 = sshll.u32 [#allocation11], 4
      %s46 = int_to_ptr.vmem [resolvable:$true] %s45
      %51 = dma.hbm_to_vmem [thread:$0]  %s2, 4096, %s46, [#allocation10], 256, 256, 16
    $region13: #{generate.1} parent=1 // pred_fallthru
      _
    // Predicated region
    $region14: #{generate.1} parent=1 // pred_check
      _
    $region15: #{generate.1} parent=1 // pred_check_branch
      %53 = sbr.rel (0) target = $region17
    $region16: #{generate.1} parent=1 // pred_region
      %s55 = ssub.s32 512, 512
      %56 = vsyncadd [#allocation13], %s55
      %s58 = sshll.u32 [#allocation12], 4
      %s59 = int_to_ptr.vmem [resolvable:$true] %s58
      %61 = dma.hbm_to_vmem [thread:$0]  %s3, 512, %s59, [#allocation13]
    $region17: #{generate.1} parent=1 // pred_fallthru
      _
    // Predicated region
    $region18: #{generate.1} parent=1 // pred_check
      _
    $region19: #{generate.1} parent=1 // pred_check_branch
      %63 = sbr.rel (0) target = $region21
    $region20: #{generate.1} parent=1 // pred_region
      %64 = dma.done [#allocation6], 16
    $region21: #{generate.1} parent=1 // pred_fallthru
      _
    // Predicated region
    $region22: #{generate.1} parent=1 // pred_check
      _
    $region23: #{generate.1} parent=1 // pred_check_branch
      %66 = sbr.rel (0) target = $region25
    $region24: #{generate.1} parent=1 // pred_region
      %67 = dma.done [#allocation10], 8192
    $region25: #{generate.1} parent=1 // pred_fallthru
      _
    // Predicated region
    $region26: #{generate.1} parent=1 // pred_check
      _
    $region27: #{generate.1} parent=1 // pred_check_branch
      %69 = sbr.rel (0) target = $region29
    $region28: #{generate.1} parent=1 // pred_region
      %70 = dma.done [#allocation10], 4096
    $region29: #{generate.1} parent=1 // pred_fallthru
      _
    // Predicated region
    $region30: #{generate.1} parent=1 // pred_check
      _
    $region31: #{generate.1} parent=1 // pred_check_branch
      %72 = sbr.rel (0) target = $region33
    $region32: #{generate.1} parent=1 // pred_region
      %73 = dma.done [#allocation13], 512
    $region33: #{generate.1} parent=1 // pred_fallthru
      _
    %v75 = vlaneseq
    %v76 = vand.u32 %v75, 127
    %v77 = vadd.s32 %v76, 128
    %v78 = vadd.s32 %v76, 256
    %v79 = vadd.s32 %v76, 384
    %v80 = vcvt.s32.f32 %v76
    %v81 = vcvt.s32.f32 %v77
    %v82 = vcvt.s32.f32 %v78
    %v83 = vcvt.s32.f32 %v79
    %s84 = scalar_lea.smem [#allocation3], 0
    %85 = sst [smem:[%s84]] 0
    %s86 = scalar_lea.smem [#allocation4], 0
    %87 = sst [smem:[%s86]] 0
    %vm88 = vcmp.eq.s32.totalorder %v76, 0
    %vm89 = vcmp.eq.s32.totalorder %v77, 0
    %vm90 = vcmp.eq.s32.totalorder %v78, 0
    %vm91 = vcmp.eq.s32.totalorder %v79, 0
    %v92 = vsel %vm88, 1, 0
    %v93 = vsel %vm89, 1, 0
    %v94 = vsel %vm90, 1, 0
    %v95 = vsel %vm91, 1, 0
    %v96 = vcvt.s32.f32 %v92
    %v97 = vcvt.s32.f32 %v93
    %v98 = vcvt.s32.f32 %v94
    %v99 = vcvt.s32.f32 %v95
    %v104 = vcombine.low %v96, %v97
    %v105 = vcombine.low %v98, %v99
    %v107 = vunpack.c.l.s4 1966171168
    %v108 = vunpack.c.0.s8 %v107
    %v109 = vlaneseq
    %v110 = vshrl.u32 %v109, 7
    %v111 = vsub.s32 %v108, %v110
    %v112 = vrot.slane %v104, %v111
    %v114 = vunpack.c.l.s4 1966171168
    %v115 = vunpack.c.0.s8 %v114
    %v116 = vlaneseq
    %v117 = vshrl.u32 %v116, 7
    %v118 = vsub.s32 %v115, %v117
    %v119 = vrot.slane %v105, %v118
    %v120 = vcombine.low %v112, %v119
    %v122 = vunpack.c.l.s4 1966171168
    %v123 = vunpack.c.0.s8 %v122
    %v124 = vlaneseq
    %v125 = vshrl.u32 %v124, 7
    %v126 = vsub.s32 %v123, %v125
    %v127 = vrot.slane %v120, %v126
    %v129 = vlaneseq
    %vm130 = vcmp.ge.s32.totalorder %v129, 0
    %vm131 = vcmp.lt.s32.totalorder %v129, 512
    %vm132 = vmand %vm130, %vm131
    %133 = vst.msk [vmem:[#allocation2] sm:$0xf] %vm132, %v127
    %134 = vst [vmem:[#allocation14] sm:$0x3f] 0.0
    %135 = vst [vmem:[#allocation14 + $0x8] sm:$0x3f] 0.0
    %136 = vst [vmem:[#allocation14 + $0x10] sm:$0x3f] 0.0
    %137 = vst [vmem:[#allocation14 + $0x18] sm:$0x3f] 0.0
    loop: start=0, step=1, limit=6
    $region34: #{generate.1} parent=1 // loop_pre_header
      _
    $region35: #{generate.1} parent=1 // loop_header
      %s139 = sphi 0, %s143
      %p140 = scmp.ge.s32.totalorder %s139, 6
    $region36: #{generate.1} parent=1 // loop_header_branch
      %142 = sbr.rel (%p140) target = $region40
    $region37: #{generate.1} parent=1 // loop_body
      %s144 = sld [smem:[#allocation4]]
      %p145 = scmp.eq.s32.totalorder %s144, 0
      // Predicated region
      $region41: #{generate.1} parent=37 // pred_check
        %p146 = pneg %p145
      $region42: #{generate.1} parent=37 // pred_check_branch
        %148 = sbr.rel (%p146) target = $region44
      $region43: #{generate.1} parent=37 // pred_region
        %s149 = sld [smem:[#allocation3]]
        %s150 = scalar_lea.vmem [#allocation9], %s149
        %v151 = vld [vmem:[%s150] sm:$0x1]
        %v152 = vld [vmem:[#allocation5] sm:$0x1]
        %v153 = vadd.f32 %v152, %v151
        %v154 = vtanh.pop %v153
        %v155 = vpack.c.bf16 %v154, %v154
        %v156 = vld [vmem:[#allocation11] sm:$0xff]
        %v157 = vld [vmem:[#allocation11 + $0x8] sm:$0xff]
        %v158 = vld [vmem:[#allocation11 + $0x10] sm:$0xff]
        %v159 = vld [vmem:[#allocation11 + $0x18] sm:$0xff]
        %v160 = vld [vmem:[#allocation11 + $0x20] sm:$0xff]
        %v161 = vld [vmem:[#allocation11 + $0x28] sm:$0xff]
        %v162 = vld [vmem:[#allocation11 + $0x30] sm:$0xff]
        %v163 = vld [vmem:[#allocation11 + $0x38] sm:$0xff]
        %v164 = vld [vmem:[#allocation11 + $0x40] sm:$0xff]
        %v165 = vld [vmem:[#allocation11 + $0x48] sm:$0xff]
        %v166 = vld [vmem:[#allocation11 + $0x50] sm:$0xff]
        %v167 = vld [vmem:[#allocation11 + $0x58] sm:$0xff]
        %v168 = vld [vmem:[#allocation11 + $0x60] sm:$0xff]
        %v169 = vld [vmem:[#allocation11 + $0x68] sm:$0xff]
        %v170 = vld [vmem:[#allocation11 + $0x70] sm:$0xff]
        %v171 = vld [vmem:[#allocation11 + $0x78] sm:$0xff]
        %v172 = vld [vmem:[#allocation11 + $0x80] sm:$0xff]
        %v173 = vld [vmem:[#allocation11 + $0x88] sm:$0xff]
        %v174 = vld [vmem:[#allocation11 + $0x90] sm:$0xff]
        %v175 = vld [vmem:[#allocation11 + $0x98] sm:$0xff]
        %v176 = vld [vmem:[#allocation11 + $0xa0] sm:$0xff]
        %v177 = vld [vmem:[#allocation11 + $0xa8] sm:$0xff]
        %v178 = vld [vmem:[#allocation11 + $0xb0] sm:$0xff]
        %v179 = vld [vmem:[#allocation11 + $0xb8] sm:$0xff]
        %v180 = vld [vmem:[#allocation11 + $0xc0] sm:$0xff]
        %v181 = vld [vmem:[#allocation11 + $0xc8] sm:$0xff]
        %v182 = vld [vmem:[#allocation11 + $0xd0] sm:$0xff]
        %v183 = vld [vmem:[#allocation11 + $0xd8] sm:$0xff]
        %v184 = vld [vmem:[#allocation11 + $0xe0] sm:$0xff]
        %v185 = vld [vmem:[#allocation11 + $0xe8] sm:$0xff]
        %v186 = vld [vmem:[#allocation11 + $0xf0] sm:$0xff]
        %v187 = vld [vmem:[#allocation11 + $0xf8] sm:$0xff]
        %v220 = vunpack.c.l.b16 %v156
        %v221 = vunpack.c.h.b16 %v156
        %v222 = vunpack.c.l.b16 %v157
        %v223 = vunpack.c.h.b16 %v157
        %v224 = vunpack.c.l.b16 %v158
        %v225 = vunpack.c.h.b16 %v158
        %v226 = vunpack.c.l.b16 %v159
        %v227 = vunpack.c.h.b16 %v159
        %v228 = vunpack.c.l.b16 %v160
        %v229 = vunpack.c.h.b16 %v160
        %v230 = vunpack.c.l.b16 %v161
        %v231 = vunpack.c.h.b16 %v161
        %v232 = vunpack.c.l.b16 %v162
        %v233 = vunpack.c.h.b16 %v162
        %v234 = vunpack.c.l.b16 %v163
        %v235 = vunpack.c.h.b16 %v163
        %v236 = vunpack.c.l.b16 %v164
        %v237 = vunpack.c.h.b16 %v164
        %v238 = vunpack.c.l.b16 %v165
        %v239 = vunpack.c.h.b16 %v165
        %v240 = vunpack.c.l.b16 %v166
        %v241 = vunpack.c.h.b16 %v166
        %v242 = vunpack.c.l.b16 %v167
        %v243 = vunpack.c.h.b16 %v167
        %v244 = vunpack.c.l.b16 %v168
        %v245 = vunpack.c.h.b16 %v168
        %v246 = vunpack.c.l.b16 %v169
        %v247 = vunpack.c.h.b16 %v169
        %v248 = vunpack.c.l.b16 %v170
        %v249 = vunpack.c.h.b16 %v170
        %v250 = vunpack.c.l.b16 %v171
        %v251 = vunpack.c.h.b16 %v171
        %v252 = vunpack.c.l.b16 %v172
        %v253 = vunpack.c.h.b16 %v172
        %v254 = vunpack.c.l.b16 %v173
        %v255 = vunpack.c.h.b16 %v173
        %v256 = vunpack.c.l.b16 %v174
        %v257 = vunpack.c.h.b16 %v174
        %v258 = vunpack.c.l.b16 %v175
        %v259 = vunpack.c.h.b16 %v175
        %v260 = vunpack.c.l.b16 %v176
        %v261 = vunpack.c.h.b16 %v176
        %v262 = vunpack.c.l.b16 %v177
        %v263 = vunpack.c.h.b16 %v177
        %v264 = vunpack.c.l.b16 %v178
        %v265 = vunpack.c.h.b16 %v178
        %v266 = vunpack.c.l.b16 %v179
        %v267 = vunpack.c.h.b16 %v179
        %v268 = vunpack.c.l.b16 %v180
        %v269 = vunpack.c.h.b16 %v180
        %v270 = vunpack.c.l.b16 %v181
        %v271 = vunpack.c.h.b16 %v181
        %v272 = vunpack.c.l.b16 %v182
        %v273 = vunpack.c.h.b16 %v182
        %v274 = vunpack.c.l.b16 %v183
        %v275 = vunpack.c.h.b16 %v183
        %v276 = vunpack.c.l.b16 %v184
        %v277 = vunpack.c.h.b16 %v184
        %v278 = vunpack.c.l.b16 %v185
        %v279 = vunpack.c.h.b16 %v185
        %v280 = vunpack.c.l.b16 %v186
        %v281 = vunpack.c.h.b16 %v186
        %v282 = vunpack.c.l.b16 %v187
        %v283 = vunpack.c.h.b16 %v187
        %v284 = vpack.c.b16 %v224, %v220
        %v285 = vpack.c.b16 %v225, %v221
        %v286 = vpack.c.b16 %v226, %v222
        %v287 = vpack.c.b16 %v227, %v223
        %v288 = vpack.c.b16 %v232, %v228
        %v289 = vpack.c.b16 %v233, %v229
        %v290 = vpack.c.b16 %v234, %v230
        %v291 = vpack.c.b16 %v235, %v231
        %v292 = vpack.c.b16 %v240, %v236
        %v293 = vpack.c.b16 %v241, %v237
        %v294 = vpack.c.b16 %v242, %v238
        %v295 = vpack.c.b16 %v243, %v239
        %v296 = vpack.c.b16 %v248, %v244
        %v297 = vpack.c.b16 %v249, %v245
        %v298 = vpack.c.b16 %v250, %v246
        %v299 = vpack.c.b16 %v251, %v247
        %v300 = vpack.c.b16 %v256, %v252
        %v301 = vpack.c.b16 %v257, %v253
        %v302 = vpack.c.b16 %v258, %v254
        %v303 = vpack.c.b16 %v259, %v255
        %v304 = vpack.c.b16 %v264, %v260
        %v305 = vpack.c.b16 %v265, %v261
        %v306 = vpack.c.b16 %v266, %v262
        %v307 = vpack.c.b16 %v267, %v263
        %v308 = vpack.c.b16 %v272, %v268
        %v309 = vpack.c.b16 %v273, %v269
        %v310 = vpack.c.b16 %v274, %v270
        %v311 = vpack.c.b16 %v275, %v271
        %v312 = vpack.c.b16 %v280, %v276
        %v313 = vpack.c.b16 %v281, %v277
        %v314 = vpack.c.b16 %v282, %v278
        %v315 = vpack.c.b16 %v283, %v279
        %348 = vmatprep.subr.bf16.mxu0 %v285
        %349 = vmatpush1.bf16.msra.mxu0 %v284
        %350 = vmatprep.subr.bf16.mxu0 %v289
        %351 = vmatpush1.bf16.msra.mxu0 %v288
        %352 = vmatprep.subr.bf16.mxu0 %v293
        %353 = vmatpush1.bf16.msra.mxu0 %v292
        %354 = vmatprep.subr.bf16.mxu0 %v297
        %355 = vmatpush1.bf16.msra.mxu0 %v296
        %356 = vmatprep.subr.bf16.mxu0 %v301
        %357 = vmatpush1.bf16.msra.mxu0 %v300
        %358 = vmatprep.subr.bf16.mxu0 %v305
        %359 = vmatpush1.bf16.msra.mxu0 %v304
        %360 = vmatprep.subr.bf16.mxu0 %v309
        %361 = vmatpush1.bf16.msra.mxu0 %v308
        %362 = vmatprep.subr.bf16.mxu0 %v313
        %363 = vmatpush1.bf16.msra.mxu0 %v312
        %364 = vmatprep.subr.bf16.mxu0 0
        %365 = vmatpush1.bf16.msra.mxu0 0
        %366 = vmatprep.subr.bf16.mxu0 0
        %367 = vmatpush1.bf16.msra.mxu0 0
        %368 = vmatprep.subr.bf16.mxu0 0
        %369 = vmatpush1.bf16.msra.mxu0 0
        %370 = vmatprep.subr.bf16.mxu0 0
        %371 = vmatpush1.bf16.msra.mxu0 0
        %372 = vmatprep.subr.bf16.mxu0 0
        %373 = vmatpush1.bf16.msra.mxu0 0
        %374 = vmatprep.subr.bf16.mxu0 0
        %375 = vmatpush1.bf16.msra.mxu0 0
        %376 = vmatprep.subr.bf16.mxu0 0
        %377 = vmatpush1.bf16.msra.mxu0 0
        %378 = vmatprep.subr.bf16.mxu0 0
        %379 = vmatpush1.bf16.msra.mxu0 0
        %380 = vmatprep.mubr.bf16.mxu0 0
        %381 = vmatmul.mubr.bf16.gmra.mrb[0].mxu0 %v155
        %v382 = vpop.f32.mrb[0].mxu0
        %v383 = vadd.f32 0.0, %v382
        %v384 = vpop.f32.mrb[0].mxu0
        %v385 = vadd.f32 0.0, %v384
        %v386 = vpop.f32.mrb[0].mxu0
        %v387 = vpop.f32.mrb[0].mxu0
        %388 = vdwg.mxu0
        %389 = vmatprep.subr.bf16.mxu0 %v287
        %390 = vmatpush1.bf16.msra.mxu0 %v286
        %391 = vmatprep.subr.bf16.mxu0 %v291
        %392 = vmatpush1.bf16.msra.mxu0 %v290
        %393 = vmatprep.subr.bf16.mxu0 %v295
        %394 = vmatpush1.bf16.msra.mxu0 %v294
        %395 = vmatprep.subr.bf16.mxu0 %v299
        %396 = vmatpush1.bf16.msra.mxu0 %v298
        %397 = vmatprep.subr.bf16.mxu0 %v303
        %398 = vmatpush1.bf16.msra.mxu0 %v302
        %399 = vmatprep.subr.bf16.mxu0 %v307
        %400 = vmatpush1.bf16.msra.mxu0 %v306
        %401 = vmatprep.subr.bf16.mxu0 %v311
        %402 = vmatpush1.bf16.msra.mxu0 %v310
        %403 = vmatprep.subr.bf16.mxu0 %v315
        %404 = vmatpush1.bf16.msra.mxu0 %v314
        %405 = vmatprep.subr.bf16.mxu0 0
        %406 = vmatpush1.bf16.msra.mxu0 0
        %407 = vmatprep.subr.bf16.mxu0 0
        %408 = vmatpush1.bf16.msra.mxu0 0
        %409 = vmatprep.subr.bf16.mxu0 0
        %410 = vmatpush1.bf16.msra.mxu0 0
        %411 = vmatprep.subr.bf16.mxu0 0
        %412 = vmatpush1.bf16.msra.mxu0 0
        %413 = vmatprep.subr.bf16.mxu0 0
        %414 = vmatpush1.bf16.msra.mxu0 0
        %415 = vmatprep.subr.bf16.mxu0 0
        %416 = vmatpush1.bf16.msra.mxu0 0
        %417 = vmatprep.subr.bf16.mxu0 0
        %418 = vmatpush1.bf16.msra.mxu0 0
        %419 = vmatprep.subr.bf16.mxu0 0
        %420 = vmatpush1.bf16.msra.mxu0 0
        %421 = vmatprep.mubr.bf16.mxu0 0
        %422 = vmatmul.mubr.bf16.gmra.mrb[0].mxu0 %v155
        %v423 = vpop.f32.mrb[0].mxu0
        %v424 = vadd.f32 0.0, %v423
        %v425 = vpop.f32.mrb[0].mxu0
        %v426 = vadd.f32 0.0, %v425
        %v427 = vpop.f32.mrb[0].mxu0
        %v428 = vpop.f32.mrb[0].mxu0
        %429 = vdwg.mxu0
        %vm430 = vcmask 1040384
        %v431 = vsel %vm430, %v383, -inf
        %v432 = vsel %vm430, %v385, -inf
        %v433 = vsel %vm430, %v424, -inf
        %v434 = vsel %vm430, %v426, -inf
        %v435 = vmax.f32 %v431, %v432
        %v436 = vmax.f32 %v433, %v434
        %v437 = vmax.f32 %v435, %v436
        %438 = vmax.xlane.f32.xlu0 %v437
        %v439 = vpop.xlane.xlu0 %438
        %v440 = vrot.slane %v439, 4
        %v441 = vmax.f32 %v439, %v440
        %v442 = vrot.slane %v441, 2
        %v443 = vmax.f32 %v441, %v442
        %v444 = vrot.slane %v443, 1
        %v445 = vmax.f32 %v443, %v444
        %s446 = vtos %v445
        %v447 = vstv %s446
        %vm448 = vcmp.eq.f32.partialorder %v383, %v447
        %vm449 = vcmp.eq.f32.partialorder %v385, %v447
        %vm450 = vcmp.eq.f32.partialorder %v424, %v447
        %vm451 = vcmp.eq.f32.partialorder %v426, %v447
        %v452 = vsel %vm448, %v80, 512.0
        %v453 = vsel %vm449, %v81, 512.0
        %v454 = vsel %vm450, %v82, 512.0
        %v455 = vsel %vm451, %v83, 512.0
        %v456 = vsel %vm430, %v452, inf
        %v457 = vsel %vm430, %v453, inf
        %v458 = vsel %vm430, %v454, inf
        %v459 = vsel %vm430, %v455, inf
        %v460 = vmin.f32 %v456, %v457
        %v461 = vmin.f32 %v458, %v459
        %v462 = vmin.f32 %v460, %v461
        %463 = vmin.xlane.f32.xlu0 %v462
        %v464 = vpop.xlane.xlu0 %463
        %v465 = vrot.slane %v464, 4
        %v466 = vmin.f32 %v464, %v465
        %v467 = vrot.slane %v466, 2
        %v468 = vmin.f32 %v466, %v467
        %v469 = vrot.slane %v468, 1
        %v470 = vmin.f32 %v468, %v469
        %s471 = vtos %v470
        %s472 = scvt.f32.s32.to.zero.pseudo %s471
        %p473 = scmp.ne.s32.totalorder %s472, 1
        %s474 = scalar_select %p473, 1, 0
        %v475 = vld [vmem:[#allocation2] sm:$0xf]
        %vm476 = vcmp.gt.f32.partialorder %v475, 0.0
        %v477 = vmul.f32 %v383, 0.8333333
        %v478 = vmul.f32 %v385, 0.8333333
        %v479 = vmul.f32 %v424, 0.8333333
        %v480 = vmul.f32 %v426, 0.8333333
        %v485 = vcombine.low %v477, %v478
        %v486 = vcombine.low %v479, %v480
        %v488 = vunpack.c.l.s4 1966171168
        %v489 = vunpack.c.0.s8 %v488
        %v490 = vlaneseq
        %v491 = vshrl.u32 %v490, 7
        %v492 = vsub.s32 %v489, %v491
        %v493 = vrot.slane %v485, %v492
        %v495 = vunpack.c.l.s4 1966171168
        %v496 = vunpack.c.0.s8 %v495
        %v497 = vlaneseq
        %v498 = vshrl.u32 %v497, 7
        %v499 = vsub.s32 %v496, %v498
        %v500 = vrot.slane %v486, %v499
        %v501 = vcombine.low %v493, %v500
        %v503 = vunpack.c.l.s4 1966171168
        %v504 = vunpack.c.0.s8 %v503
        %v505 = vlaneseq
        %v506 = vshrl.u32 %v505, 7
        %v507 = vsub.s32 %v504, %v506
        %v508 = vrot.slane %v501, %v507
        %v514 = vcombine.low %v383, %v385
        %v515 = vcombine.low %v424, %v426
        %v517 = vunpack.c.l.s4 1966171168
        %v518 = vunpack.c.0.s8 %v517
        %v519 = vlaneseq
        %v520 = vshrl.u32 %v519, 7
        %v521 = vsub.s32 %v518, %v520
        %v522 = vrot.slane %v514, %v521
        %v524 = vunpack.c.l.s4 1966171168
        %v525 = vunpack.c.0.s8 %v524
        %v526 = vlaneseq
        %v527 = vshrl.u32 %v526, 7
        %v528 = vsub.s32 %v525, %v527
        %v529 = vrot.slane %v515, %v528
        %v530 = vcombine.low %v522, %v529
        %v532 = vunpack.c.l.s4 1966171168
        %v533 = vunpack.c.0.s8 %v532
        %v534 = vlaneseq
        %v535 = vshrl.u32 %v534, 7
        %v536 = vsub.s32 %v533, %v535
        %v537 = vrot.slane %v530, %v536
        %v539 = vsel %vm476, %v508, %v537
        %v541 = vlaneseq
        %v542 = vshrl.u32 %v541, 7
        %v543 = vsub.s32 0, %v542
        %v544 = vrot.slane %v539, %v543
        %v545 = vlaneseq
        %v546 = vshrl.u32 %v545, 7
        %v547 = vsub.s32 1, %v546
        %v548 = vrot.slane %v539, %v547
        %v549 = vlaneseq
        %v550 = vshrl.u32 %v549, 7
        %v551 = vsub.s32 2, %v550
        %v552 = vrot.slane %v539, %v551
        %v553 = vlaneseq
        %v554 = vshrl.u32 %v553, 7
        %v555 = vsub.s32 3, %v554
        %v556 = vrot.slane %v539, %v555
        %vm557 = vcmp.ge.s32.totalorder %v544, 0
        %vm558 = vcmp.ge.s32.totalorder %v548, 0
        %vm559 = vcmp.ge.s32.totalorder %v552, 0
        %vm560 = vcmp.ge.s32.totalorder %v556, 0
        %v561 = vxor.u32 %v544, 2147483647
        %v562 = vxor.u32 %v548, 2147483647
        %v563 = vxor.u32 %v552, 2147483647
        %v564 = vxor.u32 %v556, 2147483647
        %v565 = vsel %vm557, %v544, %v561
        %v566 = vsel %vm558, %v548, %v562
        %v567 = vsel %vm559, %v552, %v563
        %v568 = vsel %vm560, %v556, %v564
        %vm569 = vcmp.ge.s32.totalorder %v565, 0
        %vm570 = vcmp.ge.s32.totalorder %v566, 0
        %vm571 = vcmp.ge.s32.totalorder %v567, 0
        %vm572 = vcmp.ge.s32.totalorder %v568, 0
        %v573 = vsel %vm569, 1.0, 0.0
        %v574 = vsel %vm570, 1.0, 0.0
        %v575 = vsel %vm571, 1.0, 0.0
        %v576 = vsel %vm572, 1.0, 0.0
        %v577 = vsel %vm430, %v573, 0.0
        %v578 = vsel %vm430, %v574, 0.0
        %v579 = vadd.f32 %v577, %v578
        %v580 = vsel %vm430, %v575, 0.0
        %v581 = vadd.f32 %v579, %v580
        %v582 = vsel %vm430, %v576, 0.0
        %v583 = vadd.f32 %v581, %v582
        %584 = vadd.xlane.f32.xlu0 %v583
        %v585 = vpop.xlane.xlu0 %584
        %v586 = vrot.slane %v585, 4
        %v587 = vadd.f32 %v585, %v586
        %v588 = vrot.slane %v587, 2
        %v589 = vadd.f32 %v587, %v588
        %v590 = vrot.slane %v589, 1
        %v591 = vadd.f32 %v589, %v590
        %s592 = vtos %v591
        %p593 = scmp.ge.f32.partialorder %s592, 8.0
        %s594 = scalar_select %p593, 0, 2147483648
        %s595 = scalar_select %p593, 2147483647, 4294967295
        %s596 = sand.u32 %s594, %s595
        %s597 = sxor.u32 %s594, %s595
        %s598 = sshra.s32 %s597, 1
        %s599 = sadd.s32 %s596, %s598
        %s600 = sand.u32 %s597, 1
        %s601 = sadd.s32 %s599, %s600
        %v602 = vstv %s601
        %vm603 = vcmp.ge.s32.totalorder %v565, %v602
        %vm604 = vcmp.ge.s32.totalorder %v566, %v602
        %vm605 = vcmp.ge.s32.totalorder %v567, %v602
        %vm606 = vcmp.ge.s32.totalorder %v568, %v602
        %v607 = vsel %vm603, 1.0, 0.0
        %v608 = vsel %vm604, 1.0, 0.0
        %v609 = vsel %vm605, 1.0, 0.0
        %v610 = vsel %vm606, 1.0, 0.0
        %v611 = vsel %vm430, %v607, 0.0
        %v612 = vsel %vm430, %v608, 0.0
        %v613 = vadd.f32 %v611, %v612
        %v614 = vsel %vm430, %v609, 0.0
        %v615 = vadd.f32 %v613, %v614
        %v616 = vsel %vm430, %v610, 0.0
        %v617 = vadd.f32 %v615, %v616
        %618 = vadd.xlane.f32.xlu0 %v617
        %v619 = vpop.xlane.xlu0 %618
        %v620 = vrot.slane %v619, 4
        %v621 = vadd.f32 %v619, %v620
        %v622 = vrot.slane %v621, 2
        %v623 = vadd.f32 %v621, %v622
        %v624 = vrot.slane %v623, 1
        %v625 = vadd.f32 %v623, %v624
        %s626 = vtos %v625
        %p627 = scmp.ge.f32.partialorder %s626, 8.0
        %s628 = scalar_select %p627, %s601, %s594
        %s629 = ssub.s32 %s601, 1
        %s630 = scalar_select %p627, %s595, %s629
        %s631 = sand.u32 %s628, %s630
        %s632 = sxor.u32 %s628, %s630
        %s633 = sshra.s32 %s632, 1
        %s634 = sadd.s32 %s631, %s633
        %s635 = sand.u32 %s632, 1
        %s636 = sadd.s32 %s634, %s635
        %v637 = vstv %s636
        %vm638 = vcmp.ge.s32.totalorder %v565, %v637
        %vm639 = vcmp.ge.s32.totalorder %v566, %v637
        %vm640 = vcmp.ge.s32.totalorder %v567, %v637
        %vm641 = vcmp.ge.s32.totalorder %v568, %v637
        %v642 = vsel %vm638, 1.0, 0.0
        %v643 = vsel %vm639, 1.0, 0.0
        %v644 = vsel %vm640, 1.0, 0.0
        %v645 = vsel %vm641, 1.0, 0.0
        %v646 = vsel %vm430, %v642, 0.0
        %v647 = vsel %vm430, %v643, 0.0
        %v648 = vadd.f32 %v646, %v647
        %v649 = vsel %vm430, %v644, 0.0
        %v650 = vadd.f32 %v648, %v649
        %v651 = vsel %vm430, %v645, 0.0
        %v652 = vadd.f32 %v650, %v651
        %653 = vadd.xlane.f32.xlu0 %v652
        %v654 = vpop.xlane.xlu0 %653
        %v655 = vrot.slane %v654, 4
        %v656 = vadd.f32 %v654, %v655
        %v657 = vrot.slane %v656, 2
        %v658 = vadd.f32 %v656, %v657
        %v659 = vrot.slane %v658, 1
        %v660 = vadd.f32 %v658, %v659
        %s661 = vtos %v660
        %p662 = scmp.ge.f32.partialorder %s661, 8.0
        %s663 = scalar_select %p662, %s636, %s628
        %s664 = ssub.s32 %s636, 1
        %s665 = scalar_select %p662, %s630, %s664
        %s666 = sand.u32 %s663, %s665
        %s667 = sxor.u32 %s663, %s665
        %s668 = sshra.s32 %s667, 1
        %s669 = sadd.s32 %s666, %s668
        %s670 = sand.u32 %s667, 1
        %s671 = sadd.s32 %s669, %s670
        %v672 = vstv %s671
        %vm673 = vcmp.ge.s32.totalorder %v565, %v672
        %vm674 = vcmp.ge.s32.totalorder %v566, %v672
        %vm675 = vcmp.ge.s32.totalorder %v567, %v672
        %vm676 = vcmp.ge.s32.totalorder %v568, %v672
        %v677 = vsel %vm673, 1.0, 0.0
        %v678 = vsel %vm674, 1.0, 0.0
        %v679 = vsel %vm675, 1.0, 0.0
        %v680 = vsel %vm676, 1.0, 0.0
        %v681 = vsel %vm430, %v677, 0.0
        %v682 = vsel %vm430, %v678, 0.0
        %v683 = vadd.f32 %v681, %v682
        %v684 = vsel %vm430, %v679, 0.0
        %v685 = vadd.f32 %v683, %v684
        %v686 = vsel %vm430, %v680, 0.0
        %v687 = vadd.f32 %v685, %v686
        %688 = vadd.xlane.f32.xlu0 %v687
        %v689 = vpop.xlane.xlu0 %688
        %v690 = vrot.slane %v689, 4
        %v691 = vadd.f32 %v689, %v690
        %v692 = vrot.slane %v691, 2
        %v693 = vadd.f32 %v691, %v692
        %v694 = vrot.slane %v693, 1
        %v695 = vadd.f32 %v693, %v694
        %s696 = vtos %v695
        %p697 = scmp.ge.f32.partialorder %s696, 8.0
        %s698 = scalar_select %p697, %s671, %s663
        %s699 = ssub.s32 %s671, 1
        %s700 = scalar_select %p697, %s665, %s699
        %s701 = sand.u32 %s698, %s700
        %s702 = sxor.u32 %s698, %s700
        %s703 = sshra.s32 %s702, 1
        %s704 = sadd.s32 %s701, %s703
        %s705 = sand.u32 %s702, 1
        %s706 = sadd.s32 %s704, %s705
        %v707 = vstv %s706
        %vm708 = vcmp.ge.s32.totalorder %v565, %v707
        %vm709 = vcmp.ge.s32.totalorder %v566, %v707
        %vm710 = vcmp.ge.s32.totalorder %v567, %v707
        %vm711 = vcmp.ge.s32.totalorder %v568, %v707
        %v712 = vsel %vm708, 1.0, 0.0
        %v713 = vsel %vm709, 1.0, 0.0
        %v714 = vsel %vm710, 1.0, 0.0
        %v715 = vsel %vm711, 1.0, 0.0
        %v716 = vsel %vm430, %v712, 0.0
        %v717 = vsel %vm430, %v713, 0.0
        %v718 = vadd.f32 %v716, %v717
        %v719 = vsel %vm430, %v714, 0.0
        %v720 = vadd.f32 %v718, %v719
        %v721 = vsel %vm430, %v715, 0.0
        %v722 = vadd.f32 %v720, %v721
        %723 = vadd.xlane.f32.xlu0 %v722
        %v724 = vpop.xlane.xlu0 %723
        %v725 = vrot.slane %v724, 4
        %v726 = vadd.f32 %v724, %v725
        %v727 = vrot.slane %v726, 2
        %v728 = vadd.f32 %v726, %v727
        %v729 = vrot.slane %v728, 1
        %v730 = vadd.f32 %v728, %v729
        %s731 = vtos %v730
        %p732 = scmp.ge.f32.partialorder %s731, 8.0
        %s733 = scalar_select %p732, %s706, %s698
        %s734 = ssub.s32 %s706, 1
        %s735 = scalar_select %p732, %s700, %s734
        %s736 = sand.u32 %s733, %s735
        %s737 = sxor.u32 %s733, %s735
        %s738 = sshra.s32 %s737, 1
        %s739 = sadd.s32 %s736, %s738
        %s740 = sand.u32 %s737, 1
        %s741 = sadd.s32 %s739, %s740
        %v742 = vstv %s741
        %vm743 = vcmp.ge.s32.totalorder %v565, %v742
        %vm744 = vcmp.ge.s32.totalorder %v566, %v742
        %vm745 = vcmp.ge.s32.totalorder %v567, %v742
        %vm746 = vcmp.ge.s32.totalorder %v568, %v742
        %v747 = vsel %vm743, 1.0, 0.0
        %v748 = vsel %vm744, 1.0, 0.0
        %v749 = vsel %vm745, 1.0, 0.0
        %v750 = vsel %vm746, 1.0, 0.0
        %v751 = vsel %vm430, %v747, 0.0
        %v752 = vsel %vm430, %v748, 0.0
        %v753 = vadd.f32 %v751, %v752
        %v754 = vsel %vm430, %v749, 0.0
        %v755 = vadd.f32 %v753, %v754
        %v756 = vsel %vm430, %v750, 0.0
        %v757 = vadd.f32 %v755, %v756
        %758 = vadd.xlane.f32.xlu0 %v757
        %v759 = vpop.xlane.xlu0 %758
        %v760 = vrot.slane %v759, 4
        %v761 = vadd.f32 %v759, %v760
        %v762 = vrot.slane %v761, 2
        %v763 = vadd.f32 %v761, %v762
        %v764 = vrot.slane %v763, 1
        %v765 = vadd.f32 %v763, %v764
        %s766 = vtos %v765
        %p767 = scmp.ge.f32.partialorder %s766, 8.0
        %s768 = scalar_select %p767, %s741, %s733
        %s769 = ssub.s32 %s741, 1
        %s770 = scalar_select %p767, %s735, %s769
        %s771 = sand.u32 %s768, %s770
        %s772 = sxor.u32 %s768, %s770
        %s773 = sshra.s32 %s772, 1
        %s774 = sadd.s32 %s771, %s773
        %s775 = sand.u32 %s772, 1
        %s776 = sadd.s32 %s774, %s775
        %v777 = vstv %s776
        %vm778 = vcmp.ge.s32.totalorder %v565, %v777
        %vm779 = vcmp.ge.s32.totalorder %v566, %v777
        %vm780 = vcmp.ge.s32.totalorder %v567, %v777
        %vm781 = vcmp.ge.s32.totalorder %v568, %v777
        %v782 = vsel %vm778, 1.0, 0.0
        %v783 = vsel %vm779, 1.0, 0.0
        %v784 = vsel %vm780, 1.0, 0.0
        %v785 = vsel %vm781, 1.0, 0.0
        %v786 = vsel %vm430, %v782, 0.0
        %v787 = vsel %vm430, %v783, 0.0
        %v788 = vadd.f32 %v786, %v787
        %v789 = vsel %vm430, %v784, 0.0
        %v790 = vadd.f32 %v788, %v789
        %v791 = vsel %vm430, %v785, 0.0
        %v792 = vadd.f32 %v790, %v791
        %793 = vadd.xlane.f32.xlu0 %v792
        %v794 = vpop.xlane.xlu0 %793
        %v795 = vrot.slane %v794, 4
        %v796 = vadd.f32 %v794, %v795
        %v797 = vrot.slane %v796, 2
        %v798 = vadd.f32 %v796, %v797
        %v799 = vrot.slane %v798, 1
        %v800 = vadd.f32 %v798, %v799
        %s801 = vtos %v800
        %p802 = scmp.ge.f32.partialorder %s801, 8.0
        %s803 = scalar_select %p802, %s776, %s768
        %s804 = ssub.s32 %s776, 1
        %s805 = scalar_select %p802, %s770, %s804
        %s806 = sand.u32 %s803, %s805
        %s807 = sxor.u32 %s803, %s805
        %s808 = sshra.s32 %s807, 1
        %s809 = sadd.s32 %s806, %s808
        %s810 = sand.u32 %s807, 1
        %s811 = sadd.s32 %s809, %s810
        %v812 = vstv %s811
        %vm813 = vcmp.ge.s32.totalorder %v565, %v812
        %vm814 = vcmp.ge.s32.totalorder %v566, %v812
        %vm815 = vcmp.ge.s32.totalorder %v567, %v812
        %vm816 = vcmp.ge.s32.totalorder %v568, %v812
        %v817 = vsel %vm813, 1.0, 0.0
        %v818 = vsel %vm814, 1.0, 0.0
        %v819 = vsel %vm815, 1.0, 0.0
        %v820 = vsel %vm816, 1.0, 0.0
        %v821 = vsel %vm430, %v817, 0.0
        %v822 = vsel %vm430, %v818, 0.0
        %v823 = vadd.f32 %v821, %v822
        %v824 = vsel %vm430, %v819, 0.0
        %v825 = vadd.f32 %v823, %v824
        %v826 = vsel %vm430, %v820, 0.0
        %v827 = vadd.f32 %v825, %v826
        %828 = vadd.xlane.f32.xlu0 %v827
        %v829 = vpop.xlane.xlu0 %828
        %v830 = vrot.slane %v829, 4
        %v831 = vadd.f32 %v829, %v830
        %v832 = vrot.slane %v831, 2
        %v833 = vadd.f32 %v831, %v832
        %v834 = vrot.slane %v833, 1
        %v835 = vadd.f32 %v833, %v834
        %s836 = vtos %v835
        %p837 = scmp.ge.f32.partialorder %s836, 8.0
        %s838 = scalar_select %p837, %s811, %s803
        %s839 = ssub.s32 %s811, 1
        %s840 = scalar_select %p837, %s805, %s839
        %s841 = sand.u32 %s838, %s840
        %s842 = sxor.u32 %s838, %s840
        %s843 = sshra.s32 %s842, 1
        %s844 = sadd.s32 %s841, %s843
        %s845 = sand.u32 %s842, 1
        %s846 = sadd.s32 %s844, %s845
        %v847 = vstv %s846
        %vm848 = vcmp.ge.s32.totalorder %v565, %v847
        %vm849 = vcmp.ge.s32.totalorder %v566, %v847
        %vm850 = vcmp.ge.s32.totalorder %v567, %v847
        %vm851 = vcmp.ge.s32.totalorder %v568, %v847
        %v852 = vsel %vm848, 1.0, 0.0
        %v853 = vsel %vm849, 1.0, 0.0
        %v854 = vsel %vm850, 1.0, 0.0
        %v855 = vsel %vm851, 1.0, 0.0
        %v856 = vsel %vm430, %v852, 0.0
        %v857 = vsel %vm430, %v853, 0.0
        %v858 = vadd.f32 %v856, %v857
        %v859 = vsel %vm430, %v854, 0.0
        %v860 = vadd.f32 %v858, %v859
        %v861 = vsel %vm430, %v855, 0.0
        %v862 = vadd.f32 %v860, %v861
        %863 = vadd.xlane.f32.xlu0 %v862
        %v864 = vpop.xlane.xlu0 %863
        %v865 = vrot.slane %v864, 4
        %v866 = vadd.f32 %v864, %v865
        %v867 = vrot.slane %v866, 2
        %v868 = vadd.f32 %v866, %v867
        %v869 = vrot.slane %v868, 1
        %v870 = vadd.f32 %v868, %v869
        %s871 = vtos %v870
        %p872 = scmp.ge.f32.partialorder %s871, 8.0
        %s873 = scalar_select %p872, %s846, %s838
        %s874 = ssub.s32 %s846, 1
        %s875 = scalar_select %p872, %s840, %s874
        %s876 = sand.u32 %s873, %s875
        %s877 = sxor.u32 %s873, %s875
        %s878 = sshra.s32 %s877, 1
        %s879 = sadd.s32 %s876, %s878
        %s880 = sand.u32 %s877, 1
        %s881 = sadd.s32 %s879, %s880
        %v882 = vstv %s881
        %vm883 = vcmp.ge.s32.totalorder %v565, %v882
        %vm884 = vcmp.ge.s32.totalorder %v566, %v882
        %vm885 = vcmp.ge.s32.totalorder %v567, %v882
        %vm886 = vcmp.ge.s32.totalorder %v568, %v882
        %v887 = vsel %vm883, 1.0, 0.0
        %v888 = vsel %vm884, 1.0, 0.0
        %v889 = vsel %vm885, 1.0, 0.0
        %v890 = vsel %vm886, 1.0, 0.0
        %v891 = vsel %vm430, %v887, 0.0
        %v892 = vsel %vm430, %v888, 0.0
        %v893 = vadd.f32 %v891, %v892
        %v894 = vsel %vm430, %v889, 0.0
        %v895 = vadd.f32 %v893, %v894
        %v896 = vsel %vm430, %v890, 0.0
        %v897 = vadd.f32 %v895, %v896
        %898 = vadd.xlane.f32.xlu0 %v897
        %v899 = vpop.xlane.xlu0 %898
        %v900 = vrot.slane %v899, 4
        %v901 = vadd.f32 %v899, %v900
        %v902 = vrot.slane %v901, 2
        %v903 = vadd.f32 %v901, %v902
        %v904 = vrot.slane %v903, 1
        %v905 = vadd.f32 %v903, %v904
        %s906 = vtos %v905
        %p907 = scmp.ge.f32.partialorder %s906, 8.0
        %s908 = scalar_select %p907, %s881, %s873
        %s909 = ssub.s32 %s881, 1
        %s910 = scalar_select %p907, %s875, %s909
        %s911 = sand.u32 %s908, %s910
        %s912 = sxor.u32 %s908, %s910
        %s913 = sshra.s32 %s912, 1
        %s914 = sadd.s32 %s911, %s913
        %s915 = sand.u32 %s912, 1
        %s916 = sadd.s32 %s914, %s915
        %v917 = vstv %s916
        %vm918 = vcmp.ge.s32.totalorder %v565, %v917
        %vm919 = vcmp.ge.s32.totalorder %v566, %v917
        %vm920 = vcmp.ge.s32.totalorder %v567, %v917
        %vm921 = vcmp.ge.s32.totalorder %v568, %v917
        %v922 = vsel %vm918, 1.0, 0.0
        %v923 = vsel %vm919, 1.0, 0.0
        %v924 = vsel %vm920, 1.0, 0.0
        %v925 = vsel %vm921, 1.0, 0.0
        %v926 = vsel %vm430, %v922, 0.0
        %v927 = vsel %vm430, %v923, 0.0
        %v928 = vadd.f32 %v926, %v927
        %v929 = vsel %vm430, %v924, 0.0
        %v930 = vadd.f32 %v928, %v929
        %v931 = vsel %vm430, %v925, 0.0
        %v932 = vadd.f32 %v930, %v931
        %933 = vadd.xlane.f32.xlu0 %v932
        %v934 = vpop.xlane.xlu0 %933
        %v935 = vrot.slane %v934, 4
        %v936 = vadd.f32 %v934, %v935
        %v937 = vrot.slane %v936, 2
        %v938 = vadd.f32 %v936, %v937
        %v939 = vrot.slane %v938, 1
        %v940 = vadd.f32 %v938, %v939
        %s941 = vtos %v940
        %p942 = scmp.ge.f32.partialorder %s941, 8.0
        %s943 = scalar_select %p942, %s916, %s908
        %s944 = ssub.s32 %s916, 1
        %s945 = scalar_select %p942, %s910, %s944
        %s946 = sand.u32 %s943, %s945
        %s947 = sxor.u32 %s943, %s945
        %s948 = sshra.s32 %s947, 1
        %s949 = sadd.s32 %s946, %s948
        %s950 = sand.u32 %s947, 1
        %s951 = sadd.s32 %s949, %s950
        %v952 = vstv %s951
        %vm953 = vcmp.ge.s32.totalorder %v565, %v952
        %vm954 = vcmp.ge.s32.totalorder %v566, %v952
        %vm955 = vcmp.ge.s32.totalorder %v567, %v952
        %vm956 = vcmp.ge.s32.totalorder %v568, %v952
        %v957 = vsel %vm953, 1.0, 0.0
        %v958 = vsel %vm954, 1.0, 0.0
        %v959 = vsel %vm955, 1.0, 0.0
        %v960 = vsel %vm956, 1.0, 0.0
        %v961 = vsel %vm430, %v957, 0.0
        %v962 = vsel %vm430, %v958, 0.0
        %v963 = vadd.f32 %v961, %v962
        %v964 = vsel %vm430, %v959, 0.0
        %v965 = vadd.f32 %v963, %v964
        %v966 = vsel %vm430, %v960, 0.0
        %v967 = vadd.f32 %v965, %v966
        %968 = vadd.xlane.f32.xlu0 %v967
        %v969 = vpop.xlane.xlu0 %968
        %v970 = vrot.slane %v969, 4
        %v971 = vadd.f32 %v969, %v970
        %v972 = vrot.slane %v971, 2
        %v973 = vadd.f32 %v971, %v972
        %v974 = vrot.slane %v973, 1
        %v975 = vadd.f32 %v973, %v974
        %s976 = vtos %v975
        %p977 = scmp.ge.f32.partialorder %s976, 8.0
        %s978 = scalar_select %p977, %s951, %s943
        %s979 = ssub.s32 %s951, 1
        %s980 = scalar_select %p977, %s945, %s979
        %s981 = sand.u32 %s978, %s980
        %s982 = sxor.u32 %s978, %s980
        %s983 = sshra.s32 %s982, 1
        %s984 = sadd.s32 %s981, %s983
        %s985 = sand.u32 %s982, 1
        %s986 = sadd.s32 %s984, %s985
        %v987 = vstv %s986
        %vm988 = vcmp.ge.s32.totalorder %v565, %v987
        %vm989 = vcmp.ge.s32.totalorder %v566, %v987
        %vm990 = vcmp.ge.s32.totalorder %v567, %v987
        %vm991 = vcmp.ge.s32.totalorder %v568, %v987
        %v992 = vsel %vm988, 1.0, 0.0
        %v993 = vsel %vm989, 1.0, 0.0
        %v994 = vsel %vm990, 1.0, 0.0
        %v995 = vsel %vm991, 1.0, 0.0
        %v996 = vsel %vm430, %v992, 0.0
        %v997 = vsel %vm430, %v993, 0.0
        %v998 = vadd.f32 %v996, %v997
        %v999 = vsel %vm430, %v994, 0.0
        %v1000 = vadd.f32 %v998, %v999
        %v1001 = vsel %vm430, %v995, 0.0
        %v1002 = vadd.f32 %v1000, %v1001
        %1003 = vadd.xlane.f32.xlu0 %v1002
        %v1004 = vpop.xlane.xlu0 %1003
        %v1005 = vrot.slane %v1004, 4
        %v1006 = vadd.f32 %v1004, %v1005
        %v1007 = vrot.slane %v1006, 2
        %v1008 = vadd.f32 %v1006, %v1007
        %v1009 = vrot.slane %v1008, 1
        %v1010 = vadd.f32 %v1008, %v1009
        %s1011 = vtos %v1010
        %p1012 = scmp.ge.f32.partialorder %s1011, 8.0
        %s1013 = scalar_select %p1012, %s986, %s978
        %s1014 = ssub.s32 %s986, 1
        %s1015 = scalar_select %p1012, %s980, %s1014
        %s1016 = sand.u32 %s1013, %s1015
        %s1017 = sxor.u32 %s1013, %s1015
        %s1018 = sshra.s32 %s1017, 1
        %s1019 = sadd.s32 %s1016, %s1018
        %s1020 = sand.u32 %s1017, 1
        %s1021 = sadd.s32 %s1019, %s1020
        %v1022 = vstv %s1021
        %vm1023 = vcmp.ge.s32.totalorder %v565, %v1022
        %vm1024 = vcmp.ge.s32.totalorder %v566, %v1022
        %vm1025 = vcmp.ge.s32.totalorder %v567, %v1022
        %vm1026 = vcmp.ge.s32.totalorder %v568, %v1022
        %v1027 = vsel %vm1023, 1.0, 0.0
        %v1028 = vsel %vm1024, 1.0, 0.0
        %v1029 = vsel %vm1025, 1.0, 0.0
        %v1030 = vsel %vm1026, 1.0, 0.0
        %v1031 = vsel %vm430, %v1027, 0.0
        %v1032 = vsel %vm430, %v1028, 0.0
        %v1033 = vadd.f32 %v1031, %v1032
        %v1034 = vsel %vm430, %v1029, 0.0
        %v1035 = vadd.f32 %v1033, %v1034
        %v1036 = vsel %vm430, %v1030, 0.0
        %v1037 = vadd.f32 %v1035, %v1036
        %1038 = vadd.xlane.f32.xlu0 %v1037
        %v1039 = vpop.xlane.xlu0 %1038
        %v1040 = vrot.slane %v1039, 4
        %v1041 = vadd.f32 %v1039, %v1040
        %v1042 = vrot.slane %v1041, 2
        %v1043 = vadd.f32 %v1041, %v1042
        %v1044 = vrot.slane %v1043, 1
        %v1045 = vadd.f32 %v1043, %v1044
        %s1046 = vtos %v1045
        %p1047 = scmp.ge.f32.partialorder %s1046, 8.0
        %s1048 = scalar_select %p1047, %s1021, %s1013
        %s1049 = ssub.s32 %s1021, 1
        %s1050 = scalar_select %p1047, %s1015, %s1049
        %s1051 = sand.u32 %s1048, %s1050
        %s1052 = sxor.u32 %s1048, %s1050
        %s1053 = sshra.s32 %s1052, 1
        %s1054 = sadd.s32 %s1051, %s1053
        %s1055 = sand.u32 %s1052, 1
        %s1056 = sadd.s32 %s1054, %s1055
        %v1057 = vstv %s1056
        %vm1058 = vcmp.ge.s32.totalorder %v565, %v1057
        %vm1059 = vcmp.ge.s32.totalorder %v566, %v1057
        %vm1060 = vcmp.ge.s32.totalorder %v567, %v1057
        %vm1061 = vcmp.ge.s32.totalorder %v568, %v1057
        %v1062 = vsel %vm1058, 1.0, 0.0
        %v1063 = vsel %vm1059, 1.0, 0.0
        %v1064 = vsel %vm1060, 1.0, 0.0
        %v1065 = vsel %vm1061, 1.0, 0.0
        %v1066 = vsel %vm430, %v1062, 0.0
        %v1067 = vsel %vm430, %v1063, 0.0
        %v1068 = vadd.f32 %v1066, %v1067
        %v1069 = vsel %vm430, %v1064, 0.0
        %v1070 = vadd.f32 %v1068, %v1069
        %v1071 = vsel %vm430, %v1065, 0.0
        %v1072 = vadd.f32 %v1070, %v1071
        %1073 = vadd.xlane.f32.xlu0 %v1072
        %v1074 = vpop.xlane.xlu0 %1073
        %v1075 = vrot.slane %v1074, 4
        %v1076 = vadd.f32 %v1074, %v1075
        %v1077 = vrot.slane %v1076, 2
        %v1078 = vadd.f32 %v1076, %v1077
        %v1079 = vrot.slane %v1078, 1
        %v1080 = vadd.f32 %v1078, %v1079
        %s1081 = vtos %v1080
        %p1082 = scmp.ge.f32.partialorder %s1081, 8.0
        %s1083 = scalar_select %p1082, %s1056, %s1048
        %s1084 = ssub.s32 %s1056, 1
        %s1085 = scalar_select %p1082, %s1050, %s1084
        %s1086 = sand.u32 %s1083, %s1085
        %s1087 = sxor.u32 %s1083, %s1085
        %s1088 = sshra.s32 %s1087, 1
        %s1089 = sadd.s32 %s1086, %s1088
        %s1090 = sand.u32 %s1087, 1
        %s1091 = sadd.s32 %s1089, %s1090
        %v1092 = vstv %s1091
        %vm1093 = vcmp.ge.s32.totalorder %v565, %v1092
        %vm1094 = vcmp.ge.s32.totalorder %v566, %v1092
        %vm1095 = vcmp.ge.s32.totalorder %v567, %v1092
        %vm1096 = vcmp.ge.s32.totalorder %v568, %v1092
        %v1097 = vsel %vm1093, 1.0, 0.0
        %v1098 = vsel %vm1094, 1.0, 0.0
        %v1099 = vsel %vm1095, 1.0, 0.0
        %v1100 = vsel %vm1096, 1.0, 0.0
        %v1101 = vsel %vm430, %v1097, 0.0
        %v1102 = vsel %vm430, %v1098, 0.0
        %v1103 = vadd.f32 %v1101, %v1102
        %v1104 = vsel %vm430, %v1099, 0.0
        %v1105 = vadd.f32 %v1103, %v1104
        %v1106 = vsel %vm430, %v1100, 0.0
        %v1107 = vadd.f32 %v1105, %v1106
        %1108 = vadd.xlane.f32.xlu0 %v1107
        %v1109 = vpop.xlane.xlu0 %1108
        %v1110 = vrot.slane %v1109, 4
        %v1111 = vadd.f32 %v1109, %v1110
        %v1112 = vrot.slane %v1111, 2
        %v1113 = vadd.f32 %v1111, %v1112
        %v1114 = vrot.slane %v1113, 1
        %v1115 = vadd.f32 %v1113, %v1114
        %s1116 = vtos %v1115
        %p1117 = scmp.ge.f32.partialorder %s1116, 8.0
        %s1118 = scalar_select %p1117, %s1091, %s1083
        %s1119 = ssub.s32 %s1091, 1
        %s1120 = scalar_select %p1117, %s1085, %s1119
        %s1121 = sand.u32 %s1118, %s1120
        %s1122 = sxor.u32 %s1118, %s1120
        %s1123 = sshra.s32 %s1122, 1
        %s1124 = sadd.s32 %s1121, %s1123
        %s1125 = sand.u32 %s1122, 1
        %s1126 = sadd.s32 %s1124, %s1125
        %v1127 = vstv %s1126
        %vm1128 = vcmp.ge.s32.totalorder %v565, %v1127
        %vm1129 = vcmp.ge.s32.totalorder %v566, %v1127
        %vm1130 = vcmp.ge.s32.totalorder %v567, %v1127
        %vm1131 = vcmp.ge.s32.totalorder %v568, %v1127
        %v1132 = vsel %vm1128, 1.0, 0.0
        %v1133 = vsel %vm1129, 1.0, 0.0
        %v1134 = vsel %vm1130, 1.0, 0.0
        %v1135 = vsel %vm1131, 1.0, 0.0
        %v1136 = vsel %vm430, %v1132, 0.0
        %v1137 = vsel %vm430, %v1133, 0.0
        %v1138 = vadd.f32 %v1136, %v1137
        %v1139 = vsel %vm430, %v1134, 0.0
        %v1140 = vadd.f32 %v1138, %v1139
        %v1141 = vsel %vm430, %v1135, 0.0
        %v1142 = vadd.f32 %v1140, %v1141
        %1143 = vadd.xlane.f32.xlu0 %v1142
        %v1144 = vpop.xlane.xlu0 %1143
        %v1145 = vrot.slane %v1144, 4
        %v1146 = vadd.f32 %v1144, %v1145
        %v1147 = vrot.slane %v1146, 2
        %v1148 = vadd.f32 %v1146, %v1147
        %v1149 = vrot.slane %v1148, 1
        %v1150 = vadd.f32 %v1148, %v1149
        %s1151 = vtos %v1150
        %p1152 = scmp.ge.f32.partialorder %s1151, 8.0
        %s1153 = scalar_select %p1152, %s1126, %s1118
        %s1154 = ssub.s32 %s1126, 1
        %s1155 = scalar_select %p1152, %s1120, %s1154
        %s1156 = sand.u32 %s1153, %s1155
        %s1157 = sxor.u32 %s1153, %s1155
        %s1158 = sshra.s32 %s1157, 1
        %s1159 = sadd.s32 %s1156, %s1158
        %s1160 = sand.u32 %s1157, 1
        %s1161 = sadd.s32 %s1159, %s1160
        %v1162 = vstv %s1161
        %vm1163 = vcmp.ge.s32.totalorder %v565, %v1162
        %vm1164 = vcmp.ge.s32.totalorder %v566, %v1162
        %vm1165 = vcmp.ge.s32.totalorder %v567, %v1162
        %vm1166 = vcmp.ge.s32.totalorder %v568, %v1162
        %v1167 = vsel %vm1163, 1.0, 0.0
        %v1168 = vsel %vm1164, 1.0, 0.0
        %v1169 = vsel %vm1165, 1.0, 0.0
        %v1170 = vsel %vm1166, 1.0, 0.0
        %v1171 = vsel %vm430, %v1167, 0.0
        %v1172 = vsel %vm430, %v1168, 0.0
        %v1173 = vadd.f32 %v1171, %v1172
        %v1174 = vsel %vm430, %v1169, 0.0
        %v1175 = vadd.f32 %v1173, %v1174
        %v1176 = vsel %vm430, %v1170, 0.0
        %v1177 = vadd.f32 %v1175, %v1176
        %1178 = vadd.xlane.f32.xlu0 %v1177
        %v1179 = vpop.xlane.xlu0 %1178
        %v1180 = vrot.slane %v1179, 4
        %v1181 = vadd.f32 %v1179, %v1180
        %v1182 = vrot.slane %v1181, 2
        %v1183 = vadd.f32 %v1181, %v1182
        %v1184 = vrot.slane %v1183, 1
        %v1185 = vadd.f32 %v1183, %v1184
        %s1186 = vtos %v1185
        %p1187 = scmp.ge.f32.partialorder %s1186, 8.0
        %s1188 = scalar_select %p1187, %s1161, %s1153
        %s1189 = ssub.s32 %s1161, 1
        %s1190 = scalar_select %p1187, %s1155, %s1189
        %s1191 = sand.u32 %s1188, %s1190
        %s1192 = sxor.u32 %s1188, %s1190
        %s1193 = sshra.s32 %s1192, 1
        %s1194 = sadd.s32 %s1191, %s1193
        %s1195 = sand.u32 %s1192, 1
        %s1196 = sadd.s32 %s1194, %s1195
        %v1197 = vstv %s1196
        %vm1198 = vcmp.ge.s32.totalorder %v565, %v1197
        %vm1199 = vcmp.ge.s32.totalorder %v566, %v1197
        %vm1200 = vcmp.ge.s32.totalorder %v567, %v1197
        %vm1201 = vcmp.ge.s32.totalorder %v568, %v1197
        %v1202 = vsel %vm1198, 1.0, 0.0
        %v1203 = vsel %vm1199, 1.0, 0.0
        %v1204 = vsel %vm1200, 1.0, 0.0
        %v1205 = vsel %vm1201, 1.0, 0.0
        %v1206 = vsel %vm430, %v1202, 0.0
        %v1207 = vsel %vm430, %v1203, 0.0
        %v1208 = vadd.f32 %v1206, %v1207
        %v1209 = vsel %vm430, %v1204, 0.0
        %v1210 = vadd.f32 %v1208, %v1209
        %v1211 = vsel %vm430, %v1205, 0.0
        %v1212 = vadd.f32 %v1210, %v1211
        %1213 = vadd.xlane.f32.xlu0 %v1212
        %v1214 = vpop.xlane.xlu0 %1213
        %v1215 = vrot.slane %v1214, 4
        %v1216 = vadd.f32 %v1214, %v1215
        %v1217 = vrot.slane %v1216, 2
        %v1218 = vadd.f32 %v1216, %v1217
        %v1219 = vrot.slane %v1218, 1
        %v1220 = vadd.f32 %v1218, %v1219
        %s1221 = vtos %v1220
        %p1222 = scmp.ge.f32.partialorder %s1221, 8.0
        %s1223 = scalar_select %p1222, %s1196, %s1188
        %s1224 = ssub.s32 %s1196, 1
        %s1225 = scalar_select %p1222, %s1190, %s1224
        %s1226 = sand.u32 %s1223, %s1225
        %s1227 = sxor.u32 %s1223, %s1225
        %s1228 = sshra.s32 %s1227, 1
        %s1229 = sadd.s32 %s1226, %s1228
        %s1230 = sand.u32 %s1227, 1
        %s1231 = sadd.s32 %s1229, %s1230
        %v1232 = vstv %s1231
        %vm1233 = vcmp.ge.s32.totalorder %v565, %v1232
        %vm1234 = vcmp.ge.s32.totalorder %v566, %v1232
        %vm1235 = vcmp.ge.s32.totalorder %v567, %v1232
        %vm1236 = vcmp.ge.s32.totalorder %v568, %v1232
        %v1237 = vsel %vm1233, 1.0, 0.0
        %v1238 = vsel %vm1234, 1.0, 0.0
        %v1239 = vsel %vm1235, 1.0, 0.0
        %v1240 = vsel %vm1236, 1.0, 0.0
        %v1241 = vsel %vm430, %v1237, 0.0
        %v1242 = vsel %vm430, %v1238, 0.0
        %v1243 = vadd.f32 %v1241, %v1242
        %v1244 = vsel %vm430, %v1239, 0.0
        %v1245 = vadd.f32 %v1243, %v1244
        %v1246 = vsel %vm430, %v1240, 0.0
        %v1247 = vadd.f32 %v1245, %v1246
        %1248 = vadd.xlane.f32.xlu0 %v1247
        %v1249 = vpop.xlane.xlu0 %1248
        %v1250 = vrot.slane %v1249, 4
        %v1251 = vadd.f32 %v1249, %v1250
        %v1252 = vrot.slane %v1251, 2
        %v1253 = vadd.f32 %v1251, %v1252
        %v1254 = vrot.slane %v1253, 1
        %v1255 = vadd.f32 %v1253, %v1254
        %s1256 = vtos %v1255
        %p1257 = scmp.ge.f32.partialorder %s1256, 8.0
        %s1258 = scalar_select %p1257, %s1231, %s1223
        %s1259 = ssub.s32 %s1231, 1
        %s1260 = scalar_select %p1257, %s1225, %s1259
        %s1261 = sand.u32 %s1258, %s1260
        %s1262 = sxor.u32 %s1258, %s1260
        %s1263 = sshra.s32 %s1262, 1
        %s1264 = sadd.s32 %s1261, %s1263
        %s1265 = sand.u32 %s1262, 1
        %s1266 = sadd.s32 %s1264, %s1265
        %v1267 = vstv %s1266
        %vm1268 = vcmp.ge.s32.totalorder %v565, %v1267
        %vm1269 = vcmp.ge.s32.totalorder %v566, %v1267
        %vm1270 = vcmp.ge.s32.totalorder %v567, %v1267
        %vm1271 = vcmp.ge.s32.totalorder %v568, %v1267
        %v1272 = vsel %vm1268, 1.0, 0.0
        %v1273 = vsel %vm1269, 1.0, 0.0
        %v1274 = vsel %vm1270, 1.0, 0.0
        %v1275 = vsel %vm1271, 1.0, 0.0
        %v1276 = vsel %vm430, %v1272, 0.0
        %v1277 = vsel %vm430, %v1273, 0.0
        %v1278 = vadd.f32 %v1276, %v1277
        %v1279 = vsel %vm430, %v1274, 0.0
        %v1280 = vadd.f32 %v1278, %v1279
        %v1281 = vsel %vm430, %v1275, 0.0
        %v1282 = vadd.f32 %v1280, %v1281
        %1283 = vadd.xlane.f32.xlu0 %v1282
        %v1284 = vpop.xlane.xlu0 %1283
        %v1285 = vrot.slane %v1284, 4
        %v1286 = vadd.f32 %v1284, %v1285
        %v1287 = vrot.slane %v1286, 2
        %v1288 = vadd.f32 %v1286, %v1287
        %v1289 = vrot.slane %v1288, 1
        %v1290 = vadd.f32 %v1288, %v1289
        %s1291 = vtos %v1290
        %p1292 = scmp.ge.f32.partialorder %s1291, 8.0
        %s1293 = scalar_select %p1292, %s1266, %s1258
        %s1294 = ssub.s32 %s1266, 1
        %s1295 = scalar_select %p1292, %s1260, %s1294
        %s1296 = sand.u32 %s1293, %s1295
        %s1297 = sxor.u32 %s1293, %s1295
        %s1298 = sshra.s32 %s1297, 1
        %s1299 = sadd.s32 %s1296, %s1298
        %s1300 = sand.u32 %s1297, 1
        %s1301 = sadd.s32 %s1299, %s1300
        %v1302 = vstv %s1301
        %vm1303 = vcmp.ge.s32.totalorder %v565, %v1302
        %vm1304 = vcmp.ge.s32.totalorder %v566, %v1302
        %vm1305 = vcmp.ge.s32.totalorder %v567, %v1302
        %vm1306 = vcmp.ge.s32.totalorder %v568, %v1302
        %v1307 = vsel %vm1303, 1.0, 0.0
        %v1308 = vsel %vm1304, 1.0, 0.0
        %v1309 = vsel %vm1305, 1.0, 0.0
        %v1310 = vsel %vm1306, 1.0, 0.0
        %v1311 = vsel %vm430, %v1307, 0.0
        %v1312 = vsel %vm430, %v1308, 0.0
        %v1313 = vadd.f32 %v1311, %v1312
        %v1314 = vsel %vm430, %v1309, 0.0
        %v1315 = vadd.f32 %v1313, %v1314
        %v1316 = vsel %vm430, %v1310, 0.0
        %v1317 = vadd.f32 %v1315, %v1316
        %1318 = vadd.xlane.f32.xlu0 %v1317
        %v1319 = vpop.xlane.xlu0 %1318
        %v1320 = vrot.slane %v1319, 4
        %v1321 = vadd.f32 %v1319, %v1320
        %v1322 = vrot.slane %v1321, 2
        %v1323 = vadd.f32 %v1321, %v1322
        %v1324 = vrot.slane %v1323, 1
        %v1325 = vadd.f32 %v1323, %v1324
        %s1326 = vtos %v1325
        %p1327 = scmp.ge.f32.partialorder %s1326, 8.0
        %s1328 = scalar_select %p1327, %s1301, %s1293
        %s1329 = ssub.s32 %s1301, 1
        %s1330 = scalar_select %p1327, %s1295, %s1329
        %s1331 = sand.u32 %s1328, %s1330
        %s1332 = sxor.u32 %s1328, %s1330
        %s1333 = sshra.s32 %s1332, 1
        %s1334 = sadd.s32 %s1331, %s1333
        %s1335 = sand.u32 %s1332, 1
        %s1336 = sadd.s32 %s1334, %s1335
        %v1337 = vstv %s1336
        %vm1338 = vcmp.ge.s32.totalorder %v565, %v1337
        %vm1339 = vcmp.ge.s32.totalorder %v566, %v1337
        %vm1340 = vcmp.ge.s32.totalorder %v567, %v1337
        %vm1341 = vcmp.ge.s32.totalorder %v568, %v1337
        %v1342 = vsel %vm1338, 1.0, 0.0
        %v1343 = vsel %vm1339, 1.0, 0.0
        %v1344 = vsel %vm1340, 1.0, 0.0
        %v1345 = vsel %vm1341, 1.0, 0.0
        %v1346 = vsel %vm430, %v1342, 0.0
        %v1347 = vsel %vm430, %v1343, 0.0
        %v1348 = vadd.f32 %v1346, %v1347
        %v1349 = vsel %vm430, %v1344, 0.0
        %v1350 = vadd.f32 %v1348, %v1349
        %v1351 = vsel %vm430, %v1345, 0.0
        %v1352 = vadd.f32 %v1350, %v1351
        %1353 = vadd.xlane.f32.xlu0 %v1352
        %v1354 = vpop.xlane.xlu0 %1353
        %v1355 = vrot.slane %v1354, 4
        %v1356 = vadd.f32 %v1354, %v1355
        %v1357 = vrot.slane %v1356, 2
        %v1358 = vadd.f32 %v1356, %v1357
        %v1359 = vrot.slane %v1358, 1
        %v1360 = vadd.f32 %v1358, %v1359
        %s1361 = vtos %v1360
        %p1362 = scmp.ge.f32.partialorder %s1361, 8.0
        %s1363 = scalar_select %p1362, %s1336, %s1328
        %s1364 = ssub.s32 %s1336, 1
        %s1365 = scalar_select %p1362, %s1330, %s1364
        %s1366 = sand.u32 %s1363, %s1365
        %s1367 = sxor.u32 %s1363, %s1365
        %s1368 = sshra.s32 %s1367, 1
        %s1369 = sadd.s32 %s1366, %s1368
        %s1370 = sand.u32 %s1367, 1
        %s1371 = sadd.s32 %s1369, %s1370
        %v1372 = vstv %s1371
        %vm1373 = vcmp.ge.s32.totalorder %v565, %v1372
        %vm1374 = vcmp.ge.s32.totalorder %v566, %v1372
        %vm1375 = vcmp.ge.s32.totalorder %v567, %v1372
        %vm1376 = vcmp.ge.s32.totalorder %v568, %v1372
        %v1377 = vsel %vm1373, 1.0, 0.0
        %v1378 = vsel %vm1374, 1.0, 0.0
        %v1379 = vsel %vm1375, 1.0, 0.0
        %v1380 = vsel %vm1376, 1.0, 0.0
        %v1381 = vsel %vm430, %v1377, 0.0
        %v1382 = vsel %vm430, %v1378, 0.0
        %v1383 = vadd.f32 %v1381, %v1382
        %v1384 = vsel %vm430, %v1379, 0.0
        %v1385 = vadd.f32 %v1383, %v1384
        %v1386 = vsel %vm430, %v1380, 0.0
        %v1387 = vadd.f32 %v1385, %v1386
        %1388 = vadd.xlane.f32.xlu0 %v1387
        %v1389 = vpop.xlane.xlu0 %1388
        %v1390 = vrot.slane %v1389, 4
        %v1391 = vadd.f32 %v1389, %v1390
        %v1392 = vrot.slane %v1391, 2
        %v1393 = vadd.f32 %v1391, %v1392
        %v1394 = vrot.slane %v1393, 1
        %v1395 = vadd.f32 %v1393, %v1394
        %s1396 = vtos %v1395
        %p1397 = scmp.ge.f32.partialorder %s1396, 8.0
        %s1398 = scalar_select %p1397, %s1371, %s1363
        %s1399 = ssub.s32 %s1371, 1
        %s1400 = scalar_select %p1397, %s1365, %s1399
        %s1401 = sand.u32 %s1398, %s1400
        %s1402 = sxor.u32 %s1398, %s1400
        %s1403 = sshra.s32 %s1402, 1
        %s1404 = sadd.s32 %s1401, %s1403
        %s1405 = sand.u32 %s1402, 1
        %s1406 = sadd.s32 %s1404, %s1405
        %v1407 = vstv %s1406
        %vm1408 = vcmp.ge.s32.totalorder %v565, %v1407
        %vm1409 = vcmp.ge.s32.totalorder %v566, %v1407
        %vm1410 = vcmp.ge.s32.totalorder %v567, %v1407
        %vm1411 = vcmp.ge.s32.totalorder %v568, %v1407
        %v1412 = vsel %vm1408, 1.0, 0.0
        %v1413 = vsel %vm1409, 1.0, 0.0
        %v1414 = vsel %vm1410, 1.0, 0.0
        %v1415 = vsel %vm1411, 1.0, 0.0
        %v1416 = vsel %vm430, %v1412, 0.0
        %v1417 = vsel %vm430, %v1413, 0.0
        %v1418 = vadd.f32 %v1416, %v1417
        %v1419 = vsel %vm430, %v1414, 0.0
        %v1420 = vadd.f32 %v1418, %v1419
        %v1421 = vsel %vm430, %v1415, 0.0
        %v1422 = vadd.f32 %v1420, %v1421
        %1423 = vadd.xlane.f32.xlu0 %v1422
        %v1424 = vpop.xlane.xlu0 %1423
        %v1425 = vrot.slane %v1424, 4
        %v1426 = vadd.f32 %v1424, %v1425
        %v1427 = vrot.slane %v1426, 2
        %v1428 = vadd.f32 %v1426, %v1427
        %v1429 = vrot.slane %v1428, 1
        %v1430 = vadd.f32 %v1428, %v1429
        %s1431 = vtos %v1430
        %p1432 = scmp.ge.f32.partialorder %s1431, 8.0
        %s1433 = scalar_select %p1432, %s1406, %s1398
        %s1434 = ssub.s32 %s1406, 1
        %s1435 = scalar_select %p1432, %s1400, %s1434
        %s1436 = sand.u32 %s1433, %s1435
        %s1437 = sxor.u32 %s1433, %s1435
        %s1438 = sshra.s32 %s1437, 1
        %s1439 = sadd.s32 %s1436, %s1438
        %s1440 = sand.u32 %s1437, 1
        %s1441 = sadd.s32 %s1439, %s1440
        %v1442 = vstv %s1441
        %vm1443 = vcmp.ge.s32.totalorder %v565, %v1442
        %vm1444 = vcmp.ge.s32.totalorder %v566, %v1442
        %vm1445 = vcmp.ge.s32.totalorder %v567, %v1442
        %vm1446 = vcmp.ge.s32.totalorder %v568, %v1442
        %v1447 = vsel %vm1443, 1.0, 0.0
        %v1448 = vsel %vm1444, 1.0, 0.0
        %v1449 = vsel %vm1445, 1.0, 0.0
        %v1450 = vsel %vm1446, 1.0, 0.0
        %v1451 = vsel %vm430, %v1447, 0.0
        %v1452 = vsel %vm430, %v1448, 0.0
        %v1453 = vadd.f32 %v1451, %v1452
        %v1454 = vsel %vm430, %v1449, 0.0
        %v1455 = vadd.f32 %v1453, %v1454
        %v1456 = vsel %vm430, %v1450, 0.0
        %v1457 = vadd.f32 %v1455, %v1456
        %1458 = vadd.xlane.f32.xlu0 %v1457
        %v1459 = vpop.xlane.xlu0 %1458
        %v1460 = vrot.slane %v1459, 4
        %v1461 = vadd.f32 %v1459, %v1460
        %v1462 = vrot.slane %v1461, 2
        %v1463 = vadd.f32 %v1461, %v1462
        %v1464 = vrot.slane %v1463, 1
        %v1465 = vadd.f32 %v1463, %v1464
        %s1466 = vtos %v1465
        %p1467 = scmp.ge.f32.partialorder %s1466, 8.0
        %s1468 = scalar_select %p1467, %s1441, %s1433
        %s1469 = ssub.s32 %s1441, 1
        %s1470 = scalar_select %p1467, %s1435, %s1469
        %s1471 = sand.u32 %s1468, %s1470
        %s1472 = sxor.u32 %s1468, %s1470
        %s1473 = sshra.s32 %s1472, 1
        %s1474 = sadd.s32 %s1471, %s1473
        %s1475 = sand.u32 %s1472, 1
        %s1476 = sadd.s32 %s1474, %s1475
        %v1477 = vstv %s1476
        %vm1478 = vcmp.ge.s32.totalorder %v565, %v1477
        %vm1479 = vcmp.ge.s32.totalorder %v566, %v1477
        %vm1480 = vcmp.ge.s32.totalorder %v567, %v1477
        %vm1481 = vcmp.ge.s32.totalorder %v568, %v1477
        %v1482 = vsel %vm1478, 1.0, 0.0
        %v1483 = vsel %vm1479, 1.0, 0.0
        %v1484 = vsel %vm1480, 1.0, 0.0
        %v1485 = vsel %vm1481, 1.0, 0.0
        %v1486 = vsel %vm430, %v1482, 0.0
        %v1487 = vsel %vm430, %v1483, 0.0
        %v1488 = vadd.f32 %v1486, %v1487
        %v1489 = vsel %vm430, %v1484, 0.0
        %v1490 = vadd.f32 %v1488, %v1489
        %v1491 = vsel %vm430, %v1485, 0.0
        %v1492 = vadd.f32 %v1490, %v1491
        %1493 = vadd.xlane.f32.xlu0 %v1492
        %v1494 = vpop.xlane.xlu0 %1493
        %v1495 = vrot.slane %v1494, 4
        %v1496 = vadd.f32 %v1494, %v1495
        %v1497 = vrot.slane %v1496, 2
        %v1498 = vadd.f32 %v1496, %v1497
        %v1499 = vrot.slane %v1498, 1
        %v1500 = vadd.f32 %v1498, %v1499
        %s1501 = vtos %v1500
        %p1502 = scmp.ge.f32.partialorder %s1501, 8.0
        %s1503 = scalar_select %p1502, %s1476, %s1468
        %s1504 = ssub.s32 %s1476, 1
        %s1505 = scalar_select %p1502, %s1470, %s1504
        %s1506 = sand.u32 %s1503, %s1505
        %s1507 = sxor.u32 %s1503, %s1505
        %s1508 = sshra.s32 %s1507, 1
        %s1509 = sadd.s32 %s1506, %s1508
        %s1510 = sand.u32 %s1507, 1
        %s1511 = sadd.s32 %s1509, %s1510
        %v1512 = vstv %s1511
        %vm1513 = vcmp.ge.s32.totalorder %v565, %v1512
        %vm1514 = vcmp.ge.s32.totalorder %v566, %v1512
        %vm1515 = vcmp.ge.s32.totalorder %v567, %v1512
        %vm1516 = vcmp.ge.s32.totalorder %v568, %v1512
        %v1517 = vsel %vm1513, 1.0, 0.0
        %v1518 = vsel %vm1514, 1.0, 0.0
        %v1519 = vsel %vm1515, 1.0, 0.0
        %v1520 = vsel %vm1516, 1.0, 0.0
        %v1521 = vsel %vm430, %v1517, 0.0
        %v1522 = vsel %vm430, %v1518, 0.0
        %v1523 = vadd.f32 %v1521, %v1522
        %v1524 = vsel %vm430, %v1519, 0.0
        %v1525 = vadd.f32 %v1523, %v1524
        %v1526 = vsel %vm430, %v1520, 0.0
        %v1527 = vadd.f32 %v1525, %v1526
        %1528 = vadd.xlane.f32.xlu0 %v1527
        %v1529 = vpop.xlane.xlu0 %1528
        %v1530 = vrot.slane %v1529, 4
        %v1531 = vadd.f32 %v1529, %v1530
        %v1532 = vrot.slane %v1531, 2
        %v1533 = vadd.f32 %v1531, %v1532
        %v1534 = vrot.slane %v1533, 1
        %v1535 = vadd.f32 %v1533, %v1534
        %s1536 = vtos %v1535
        %p1537 = scmp.ge.f32.partialorder %s1536, 8.0
        %s1538 = scalar_select %p1537, %s1511, %s1503
        %s1539 = ssub.s32 %s1511, 1
        %s1540 = scalar_select %p1537, %s1505, %s1539
        %s1541 = sand.u32 %s1538, %s1540
        %s1542 = sxor.u32 %s1538, %s1540
        %s1543 = sshra.s32 %s1542, 1
        %s1544 = sadd.s32 %s1541, %s1543
        %s1545 = sand.u32 %s1542, 1
        %s1546 = sadd.s32 %s1544, %s1545
        %v1547 = vstv %s1546
        %vm1548 = vcmp.ge.s32.totalorder %v565, %v1547
        %vm1549 = vcmp.ge.s32.totalorder %v566, %v1547
        %vm1550 = vcmp.ge.s32.totalorder %v567, %v1547
        %vm1551 = vcmp.ge.s32.totalorder %v568, %v1547
        %v1552 = vsel %vm1548, 1.0, 0.0
        %v1553 = vsel %vm1549, 1.0, 0.0
        %v1554 = vsel %vm1550, 1.0, 0.0
        %v1555 = vsel %vm1551, 1.0, 0.0
        %v1556 = vsel %vm430, %v1552, 0.0
        %v1557 = vsel %vm430, %v1553, 0.0
        %v1558 = vadd.f32 %v1556, %v1557
        %v1559 = vsel %vm430, %v1554, 0.0
        %v1560 = vadd.f32 %v1558, %v1559
        %v1561 = vsel %vm430, %v1555, 0.0
        %v1562 = vadd.f32 %v1560, %v1561
        %1563 = vadd.xlane.f32.xlu0 %v1562
        %v1564 = vpop.xlane.xlu0 %1563
        %v1565 = vrot.slane %v1564, 4
        %v1566 = vadd.f32 %v1564, %v1565
        %v1567 = vrot.slane %v1566, 2
        %v1568 = vadd.f32 %v1566, %v1567
        %v1569 = vrot.slane %v1568, 1
        %v1570 = vadd.f32 %v1568, %v1569
        %s1571 = vtos %v1570
        %p1572 = scmp.ge.f32.partialorder %s1571, 8.0
        %s1573 = scalar_select %p1572, %s1546, %s1538
        %s1574 = ssub.s32 %s1546, 1
        %s1575 = scalar_select %p1572, %s1540, %s1574
        %s1576 = sand.u32 %s1573, %s1575
        %s1577 = sxor.u32 %s1573, %s1575
        %s1578 = sshra.s32 %s1577, 1
        %s1579 = sadd.s32 %s1576, %s1578
        %s1580 = sand.u32 %s1577, 1
        %s1581 = sadd.s32 %s1579, %s1580
        %v1582 = vstv %s1581
        %vm1583 = vcmp.ge.s32.totalorder %v565, %v1582
        %vm1584 = vcmp.ge.s32.totalorder %v566, %v1582
        %vm1585 = vcmp.ge.s32.totalorder %v567, %v1582
        %vm1586 = vcmp.ge.s32.totalorder %v568, %v1582
        %v1587 = vsel %vm1583, 1.0, 0.0
        %v1588 = vsel %vm1584, 1.0, 0.0
        %v1589 = vsel %vm1585, 1.0, 0.0
        %v1590 = vsel %vm1586, 1.0, 0.0
        %v1591 = vsel %vm430, %v1587, 0.0
        %v1592 = vsel %vm430, %v1588, 0.0
        %v1593 = vadd.f32 %v1591, %v1592
        %v1594 = vsel %vm430, %v1589, 0.0
        %v1595 = vadd.f32 %v1593, %v1594
        %v1596 = vsel %vm430, %v1590, 0.0
        %v1597 = vadd.f32 %v1595, %v1596
        %1598 = vadd.xlane.f32.xlu0 %v1597
        %v1599 = vpop.xlane.xlu0 %1598
        %v1600 = vrot.slane %v1599, 4
        %v1601 = vadd.f32 %v1599, %v1600
        %v1602 = vrot.slane %v1601, 2
        %v1603 = vadd.f32 %v1601, %v1602
        %v1604 = vrot.slane %v1603, 1
        %v1605 = vadd.f32 %v1603, %v1604
        %s1606 = vtos %v1605
        %p1607 = scmp.ge.f32.partialorder %s1606, 8.0
        %s1608 = scalar_select %p1607, %s1581, %s1573
        %s1609 = ssub.s32 %s1581, 1
        %s1610 = scalar_select %p1607, %s1575, %s1609
        %s1611 = sand.u32 %s1608, %s1610
        %s1612 = sxor.u32 %s1608, %s1610
        %s1613 = sshra.s32 %s1612, 1
        %s1614 = sadd.s32 %s1611, %s1613
        %s1615 = sand.u32 %s1612, 1
        %s1616 = sadd.s32 %s1614, %s1615
        %v1617 = vstv %s1616
        %vm1618 = vcmp.ge.s32.totalorder %v565, %v1617
        %vm1619 = vcmp.ge.s32.totalorder %v566, %v1617
        %vm1620 = vcmp.ge.s32.totalorder %v567, %v1617
        %vm1621 = vcmp.ge.s32.totalorder %v568, %v1617
        %v1622 = vsel %vm1618, 1.0, 0.0
        %v1623 = vsel %vm1619, 1.0, 0.0
        %v1624 = vsel %vm1620, 1.0, 0.0
        %v1625 = vsel %vm1621, 1.0, 0.0
        %v1626 = vsel %vm430, %v1622, 0.0
        %v1627 = vsel %vm430, %v1623, 0.0
        %v1628 = vadd.f32 %v1626, %v1627
        %v1629 = vsel %vm430, %v1624, 0.0
        %v1630 = vadd.f32 %v1628, %v1629
        %v1631 = vsel %vm430, %v1625, 0.0
        %v1632 = vadd.f32 %v1630, %v1631
        %1633 = vadd.xlane.f32.xlu0 %v1632
        %v1634 = vpop.xlane.xlu0 %1633
        %v1635 = vrot.slane %v1634, 4
        %v1636 = vadd.f32 %v1634, %v1635
        %v1637 = vrot.slane %v1636, 2
        %v1638 = vadd.f32 %v1636, %v1637
        %v1639 = vrot.slane %v1638, 1
        %v1640 = vadd.f32 %v1638, %v1639
        %s1641 = vtos %v1640
        %p1642 = scmp.ge.f32.partialorder %s1641, 8.0
        %s1643 = scalar_select %p1642, %s1616, %s1608
        %s1644 = ssub.s32 %s1616, 1
        %s1645 = scalar_select %p1642, %s1610, %s1644
        %s1646 = sand.u32 %s1643, %s1645
        %s1647 = sxor.u32 %s1643, %s1645
        %s1648 = sshra.s32 %s1647, 1
        %s1649 = sadd.s32 %s1646, %s1648
        %s1650 = sand.u32 %s1647, 1
        %s1651 = sadd.s32 %s1649, %s1650
        %v1652 = vstv %s1651
        %vm1653 = vcmp.ge.s32.totalorder %v565, %v1652
        %vm1654 = vcmp.ge.s32.totalorder %v566, %v1652
        %vm1655 = vcmp.ge.s32.totalorder %v567, %v1652
        %vm1656 = vcmp.ge.s32.totalorder %v568, %v1652
        %v1657 = vsel %vm1653, 1.0, 0.0
        %v1658 = vsel %vm1654, 1.0, 0.0
        %v1659 = vsel %vm1655, 1.0, 0.0
        %v1660 = vsel %vm1656, 1.0, 0.0
        %v1661 = vsel %vm430, %v1657, 0.0
        %v1662 = vsel %vm430, %v1658, 0.0
        %v1663 = vadd.f32 %v1661, %v1662
        %v1664 = vsel %vm430, %v1659, 0.0
        %v1665 = vadd.f32 %v1663, %v1664
        %v1666 = vsel %vm430, %v1660, 0.0
        %v1667 = vadd.f32 %v1665, %v1666
        %1668 = vadd.xlane.f32.xlu0 %v1667
        %v1669 = vpop.xlane.xlu0 %1668
        %v1670 = vrot.slane %v1669, 4
        %v1671 = vadd.f32 %v1669, %v1670
        %v1672 = vrot.slane %v1671, 2
        %v1673 = vadd.f32 %v1671, %v1672
        %v1674 = vrot.slane %v1673, 1
        %v1675 = vadd.f32 %v1673, %v1674
        %s1676 = vtos %v1675
        %p1677 = scmp.ge.f32.partialorder %s1676, 8.0
        %s1678 = scalar_select %p1677, %s1651, %s1643
        %v1679 = vstv %s1678
        %vm1680 = vcmp.lt.s32.totalorder %v565, %v1679
        %vm1681 = vcmp.lt.s32.totalorder %v566, %v1679
        %vm1682 = vcmp.lt.s32.totalorder %v567, %v1679
        %vm1683 = vcmp.lt.s32.totalorder %v568, %v1679
        %v1688 = vsel %vm1680, -inf, %v544
        %v1689 = vsel %vm1681, -inf, %v548
        %v1690 = vsel %vm1682, -inf, %v552
        %v1691 = vsel %vm1683, -inf, %v556
        %s1692 = sshra.s32 %s139, 3
        %s1693 = sand.u32 %s139, 7
        %s1694 = sshra.s32 %s139, 3
        %s1695 = sand.u32 %s139, 7
        %s1696 = smul.u32 %s1692, 4
        %s1697 = smul.u32 %s1696, 8
        %s1698 = sadd.s32 %s1697, %s1695
        %s1699 = scalar_lea.vmem [#allocation12], %s1698
        %v1700 = vld [vmem:[%s1699] ss:$8 sm:$0xf]
        %v1702 = vlaneseq
        %v1703 = vshrl.u32 %v1702, 7
        %v1704 = vsub.s32 0, %v1703
        %v1705 = vrot.slane %v1700, %v1704
        %v1706 = vlaneseq
        %v1707 = vshrl.u32 %v1706, 7
        %v1708 = vsub.s32 1, %v1707
        %v1709 = vrot.slane %v1700, %v1708
        %v1710 = vlaneseq
        %v1711 = vshrl.u32 %v1710, 7
        %v1712 = vsub.s32 2, %v1711
        %v1713 = vrot.slane %v1700, %v1712
        %v1714 = vlaneseq
        %v1715 = vshrl.u32 %v1714, 7
        %v1716 = vsub.s32 3, %v1715
        %v1717 = vrot.slane %v1700, %v1716
        %v1722 = vadd.f32 %v1688, %v1705
        %v1723 = vadd.f32 %v1689, %v1709
        %v1724 = vadd.f32 %v1690, %v1713
        %v1725 = vadd.f32 %v1691, %v1717
        %v1726 = vsel %vm430, %v1722, -inf
        %v1727 = vsel %vm430, %v1723, -inf
        %v1728 = vsel %vm430, %v1724, -inf
        %v1729 = vsel %vm430, %v1725, -inf
        %v1730 = vmax.f32 %v1726, %v1727
        %v1731 = vmax.f32 %v1728, %v1729
        %v1732 = vmax.f32 %v1730, %v1731
        %1733 = vmax.xlane.f32.xlu0 %v1732
        %v1734 = vpop.xlane.xlu0 %1733
        %v1735 = vrot.slane %v1734, 4
        %v1736 = vmax.f32 %v1734, %v1735
        %v1737 = vrot.slane %v1736, 2
        %v1738 = vmax.f32 %v1736, %v1737
        %v1739 = vrot.slane %v1738, 1
        %v1740 = vmax.f32 %v1738, %v1739
        %s1741 = vtos %v1740
        %v1742 = vstv %s1741
        %vm1743 = vcmp.eq.f32.partialorder %v1722, %v1742
        %vm1744 = vcmp.eq.f32.partialorder %v1723, %v1742
        %vm1745 = vcmp.eq.f32.partialorder %v1724, %v1742
        %vm1746 = vcmp.eq.f32.partialorder %v1725, %v1742
        %v1747 = vsel %vm1743, %v80, 512.0
        %v1748 = vsel %vm1744, %v81, 512.0
        %v1749 = vsel %vm1745, %v82, 512.0
        %v1750 = vsel %vm1746, %v83, 512.0
        %v1751 = vsel %vm430, %v1747, inf
        %v1752 = vsel %vm430, %v1748, inf
        %v1753 = vsel %vm430, %v1749, inf
        %v1754 = vsel %vm430, %v1750, inf
        %v1755 = vmin.f32 %v1751, %v1752
        %v1756 = vmin.f32 %v1753, %v1754
        %v1757 = vmin.f32 %v1755, %v1756
        %1758 = vmin.xlane.f32.xlu0 %v1757
        %v1759 = vpop.xlane.xlu0 %1758
        %v1760 = vrot.slane %v1759, 4
        %v1761 = vmin.f32 %v1759, %v1760
        %v1762 = vrot.slane %v1761, 2
        %v1763 = vmin.f32 %v1761, %v1762
        %v1764 = vrot.slane %v1763, 1
        %v1765 = vmin.f32 %v1763, %v1764
        %s1766 = vtos %v1765
        %s1767 = scvt.f32.s32.to.zero.pseudo %s1766
        %s1768 = scalar_select %p473, %s1767, %s149
        %1769 = sst [smem:[%s84]] %s1768
        %s1770 = ssub.s32 1, %s474
        %1771 = sst [smem:[%s86]] %s1770
        %v1772 = vstv %s1768
        %vm1773 = vcmp.eq.s32.totalorder %v76, %v1772
        %vm1774 = vcmp.eq.s32.totalorder %v77, %v1772
        %vm1775 = vcmp.eq.s32.totalorder %v78, %v1772
        %vm1776 = vcmp.eq.s32.totalorder %v79, %v1772
        %v1777 = vstv %s474
        %vm1778 = vcmp.eq.s32.totalorder %v1777, 1
        %vm1779 = vmand %vm1778, %vm1773
        %vm1780 = vmand %vm1778, %vm1774
        %vm1781 = vmand %vm1778, %vm1775
        %vm1782 = vmand %vm1778, %vm1776
        %v1783 = vld [vmem:[#allocation2] sm:$0xf]
        %v1785 = vlaneseq
        %v1786 = vshrl.u32 %v1785, 7
        %v1787 = vsub.s32 0, %v1786
        %v1788 = vrot.slane %v1783, %v1787
        %v1789 = vlaneseq
        %v1790 = vshrl.u32 %v1789, 7
        %v1791 = vsub.s32 1, %v1790
        %v1792 = vrot.slane %v1783, %v1791
        %v1793 = vlaneseq
        %v1794 = vshrl.u32 %v1793, 7
        %v1795 = vsub.s32 2, %v1794
        %v1796 = vrot.slane %v1783, %v1795
        %v1797 = vlaneseq
        %v1798 = vshrl.u32 %v1797, 7
        %v1799 = vsub.s32 3, %v1798
        %v1800 = vrot.slane %v1783, %v1799
        %v1805 = vsel %vm1779, 1.0, %v1788
        %v1806 = vsel %vm1780, 1.0, %v1792
        %v1807 = vsel %vm1781, 1.0, %v1796
        %v1808 = vsel %vm1782, 1.0, %v1800
        %v1813 = vcombine.low %v1805, %v1806
        %v1814 = vcombine.low %v1807, %v1808
        %v1816 = vunpack.c.l.s4 1966171168
        %v1817 = vunpack.c.0.s8 %v1816
        %v1818 = vlaneseq
        %v1819 = vshrl.u32 %v1818, 7
        %v1820 = vsub.s32 %v1817, %v1819
        %v1821 = vrot.slane %v1813, %v1820
        %v1823 = vunpack.c.l.s4 1966171168
        %v1824 = vunpack.c.0.s8 %v1823
        %v1825 = vlaneseq
        %v1826 = vshrl.u32 %v1825, 7
        %v1827 = vsub.s32 %v1824, %v1826
        %v1828 = vrot.slane %v1814, %v1827
        %v1829 = vcombine.low %v1821, %v1828
        %v1831 = vunpack.c.l.s4 1966171168
        %v1832 = vunpack.c.0.s8 %v1831
        %v1833 = vlaneseq
        %v1834 = vshrl.u32 %v1833, 7
        %v1835 = vsub.s32 %v1832, %v1834
        %v1836 = vrot.slane %v1829, %v1835
        %1838 = vst.msk [vmem:[#allocation2] sm:$0xf] %vm132, %v1836
        %v1843 = vcombine.low %v1688, %v1689
        %v1844 = vcombine.low %v1690, %v1691
        %v1846 = vunpack.c.l.s4 1966171168
        %v1847 = vunpack.c.0.s8 %v1846
        %v1848 = vlaneseq
        %v1849 = vshrl.u32 %v1848, 7
        %v1850 = vsub.s32 %v1847, %v1849
        %v1851 = vrot.slane %v1843, %v1850
        %v1853 = vunpack.c.l.s4 1966171168
        %v1854 = vunpack.c.0.s8 %v1853
        %v1855 = vlaneseq
        %v1856 = vshrl.u32 %v1855, 7
        %v1857 = vsub.s32 %v1854, %v1856
        %v1858 = vrot.slane %v1844, %v1857
        %v1859 = vcombine.low %v1851, %v1858
        %v1861 = vunpack.c.l.s4 1966171168
        %v1862 = vunpack.c.0.s8 %v1861
        %v1863 = vlaneseq
        %v1864 = vshrl.u32 %v1863, 7
        %v1865 = vsub.s32 %v1862, %v1864
        %v1866 = vrot.slane %v1859, %v1865
        %s1868 = scalar_lea.vmem [#allocation14], %s1698
        %1869 = vst.msk [vmem:[%s1868] ss:$8 sm:$0xf] %vm132, %v1866
        %1870 = vst.msk [vmem:[%s1868] ss:$8 sm:$0x0] %vm132, %v1866
        %s1871 = scalar_lea.smem [#allocation15], %s139
        %1872 = sst [smem:[%s1871]] %s1768
        %s1873 = scalar_lea.smem [#allocation16], %s139
        %1874 = sst [smem:[%s1873]] %s474
      $region44: #{generate.1} parent=37 // pred_fallthru
        _
      %p1875 = scmp.ne.s32.totalorder %s144, 0
      // Predicated region
      $region45: #{generate.1} parent=37 // pred_check
        %p1876 = pneg %p1875
      $region46: #{generate.1} parent=37 // pred_check_branch
        %1878 = sbr.rel (%p1876) target = $region48
      $region47: #{generate.1} parent=37 // pred_region
        %s1879 = sld [smem:[#allocation3]]
        %s1880 = scalar_lea.smem [#allocation15], %s139
        %1881 = sst [smem:[%s1880]] %s1879
        %s1882 = scalar_lea.smem [#allocation16], %s139
        %1883 = sst [smem:[%s1882]] 0
      $region48: #{generate.1} parent=37 // pred_fallthru
        _
    $region38: #{generate.1} parent=1 // loop_footer
      %s143 = sadd.s32 1, %s139
    $region39: #{generate.1} parent=1 // loop_footer_branch
      %138 = sbr.rel target = $region35
    $region40: #{generate.1} parent=1 // loop_exit
      _
    // Predicated region
    $region49: #{generate.1} parent=1 // pred_check
      _
    $region50: #{generate.1} parent=1 // pred_check_branch
      %1885 = sbr.rel (0) target = $region52
    $region51: #{generate.1} parent=1 // pred_region
      %s1887 = ssub.s32 512, 512
      %1888 = vsyncadd [#allocation7], %s1887
      %s1890 = sshll.u32 [#allocation14], 4
      %s1891 = int_to_ptr.vmem [resolvable:$true] %s1890
      %1893 = dma.vmem_to_hbm [thread:$0]  %s1891, 512, %s4, [#allocation7]
    $region52: #{generate.1} parent=1 // pred_fallthru
      _
    // Predicated region
    $region53: #{generate.1} parent=1 // pred_check
      _
    $region54: #{generate.1} parent=1 // pred_check_branch
      %1895 = sbr.rel (0) target = $region56
    $region55: #{generate.1} parent=1 // pred_region
      %s1897 = ssub.s32 16, 16
      %1898 = vsyncadd [#allocation8], %s1897
      %1901 = dma.smem_to_hbm [#allocation15], 16, %s5, [#allocation8]
    $region56: #{generate.1} parent=1 // pred_fallthru
      _
    // Predicated region
    $region57: #{generate.1} parent=1 // pred_check
      _
    $region58: #{generate.1} parent=1 // pred_check_branch
      %1903 = sbr.rel (0) target = $region60
    $region59: #{generate.1} parent=1 // pred_region
      %s1905 = ssub.s32 16, 16
      %1906 = vsyncadd [#allocation17], %s1905
      %1909 = dma.smem_to_hbm [#allocation16], 16, %s6, [#allocation17]
    $region60: #{generate.1} parent=1 // pred_fallthru
      _
    // Predicated region
    $region61: #{generate.1} parent=1 // pred_check
      _
    $region62: #{generate.1} parent=1 // pred_check_branch
      %1911 = sbr.rel (0) target = $region64
    $region63: #{generate.1} parent=1 // pred_region
      %1912 = dma.done [#allocation7], 512
    $region64: #{generate.1} parent=1 // pred_fallthru
      _
    // Predicated region
    $region65: #{generate.1} parent=1 // pred_check
      _
    $region66: #{generate.1} parent=1 // pred_check_branch
      %1914 = sbr.rel (0) target = $region68
    $region67: #{generate.1} parent=1 // pred_region
      %1915 = dma.done [#allocation8], 16
    $region68: #{generate.1} parent=1 // pred_fallthru
      _
    // Predicated region
    $region69: #{generate.1} parent=1 // pred_check
      _
    $region70: #{generate.1} parent=1 // pred_check_branch
      %1917 = sbr.rel (0) target = $region72
    $region71: #{generate.1} parent=1 // pred_region
      %1918 = dma.done [#allocation17], 16
    $region72: #{generate.1} parent=1 // pred_fallthru
      _
    %1919 = sfence
    %1920 = vsyncpa [#allocation6], 1
    %1921 = vsyncpa [#allocation10], 1
    %1922 = vsyncpa [#allocation13], 1
    %1923 = vsyncpa [#allocation7], 1
    %1924 = vsyncpa [#allocation8], 1
    %1925 = vsyncpa [#allocation17], 1

</llo_original>
